<compile_context>
chip_gen: v6e
topology: v6e:2x2x1
jax: 0.10.0
libtpu: 0.0.40
codegen_flags: <defaults>
</compile_context>

<pallas_src>
import functools

import jax
import jax.numpy as jnp
from jax import lax
from jax.experimental import pallas as pl
from jax.experimental.pallas import tpu as pltpu

_VMEM_LIMIT = 32 * 1024 * 1024  # safe on v5e/v6e/v7x; chunked working set is far below this


# --------------------------------------------------------------------------------------
# Pass 1: bulk input projection -> bf16 gate pre-activations in HBM
# --------------------------------------------------------------------------------------
def input_proj_kernel(x_ref, wih_ref, b_ref, o_ref):
    acc = jnp.dot(x_ref[...], wih_ref[...], preferred_element_type=jnp.float32)
    o_ref[...] = (acc + b_ref[...]).astype(o_ref.dtype)


# --------------------------------------------------------------------------------------
# Pass 2: serial bidirectional LSTM recurrence + final FC + sigmoid
# --------------------------------------------------------------------------------------
def bilstm_kernel(gf_ref, gb_ref, whhf_ref, whhb_ref, fcw_ref, fcb_ref, out_ref,
                  hf_ref, cf_ref, hb_ref, cb_ref):
    ti = pl.program_id(1)
    nt = pl.num_programs(1)
    CT, Bt, H4 = gf_ref.shape
    H = H4 // 4

    @pl.when(ti == 0)
    def _():
        hf_ref[...] = jnp.zeros_like(hf_ref)
        cf_ref[...] = jnp.zeros_like(cf_ref)
        hb_ref[...] = jnp.zeros_like(hb_ref)
        cb_ref[...] = jnp.zeros_like(cb_ref)

    whh_f = whhf_ref[...]                                           # (H, 4H) bf16
    whh_b = whhb_ref[...]                                           # (H, 4H) bf16

    def cell(gates, c):
        # fused gate order (i, f, o, g): ONE sigmoid over a contiguous (Bt, 3H) block and
        # one tanh over (Bt, H) per direction (fewer EUP dispatches / lane slices per step).
        sig = jax.nn.sigmoid(gates[:, : 3 * H])
        g = jnp.tanh(gates[:, 3 * H:])
        i = sig[:, :H]
        f = sig[:, H:2 * H]
        o = sig[:, 2 * H:]
        c_new = f * c + i * g
        h_new = o * jnp.tanh(c_new)
        return h_new, c_new

    def body(s, carry):
        h_f, c_f, h_b, c_b = carry
        # Two independent (Bt,H)x(H,4H) matmuls, one per direction: fits v5e's 128-deep MXU
        # without multiplying zero blocks, and the two chains have no data dependence on each
        # other, so one chain's sigmoid/tanh overlaps the other chain's matmul.
        g_f = gf_ref[s].astype(jnp.float32) + jnp.dot(
            h_f.astype(whh_f.dtype), whh_f, preferred_element_type=jnp.float32)
        g_b = gb_ref[CT - 1 - s].astype(jnp.float32) + jnp.dot(
            h_b.astype(whh_b.dtype), whh_b, preferred_element_type=jnp.float32)
        h_f, c_f = cell(g_f, c_f)
        h_b, c_b = cell(g_b, c_b)
        return h_f, c_f, h_b, c_b

    carry0 = (hf_ref[...], cf_ref[...], hb_ref[...], cb_ref[...])
    # Modest unroll: at production (B~64, H=128) each in-flight iteration holds ~64 vregs of
    # gate values, so a large unroll would spill onto the serial critical path.
    h_f, c_f, h_b, c_b = lax.fori_loop(0, CT, body, carry0, unroll=min(4, CT))
    hf_ref[...] = h_f
    cf_ref[...] = c_f
    hb_ref[...] = h_b
    cb_ref[...] = c_b

    @pl.when(ti == nt - 1)
    def _():
        # Final hiddens: forward after t=T-1, backward after t=0 (matches torch h_n[0], h_n[1]).
        h_cat = jnp.concatenate([h_f, h_b], axis=1)                  # (Bt, 2H) f32
        # FC weight is lane-replicated to 128 columns host-side -> unmasked lane-dense store.
        logits = jnp.dot(h_cat, fcw_ref[...],
                         preferred_element_type=jnp.float32) + fcb_ref[...]
        out_ref[...] = jax.nn.sigmoid(logits)


# --------------------------------------------------------------------------------------
# Host-side parameter re-layout
# --------------------------------------------------------------------------------------
def _reorder_gates(w, axis):
    """torch gate order (i, f, g, o) -> kernel order (i, f, o, g) along the 4H axis."""
    i_, f_, g_, o_ = jnp.split(w, 4, axis=axis)
    return jnp.concatenate([i_, f_, o_, g_], axis=axis)


def fuse_params(params):
    """One-time host-side re-layout: transpose to (in, out), reorder gate columns, fuse the
    two directions' input projections, cast MXU operands + embedding to bf16, lane-replicate
    the tiny FC so the kernel's output store is lane-dense."""
    return {
        "embedding": params["embedding"].astype(jnp.bfloat16),                     # (V, E) bf16
        "wih": jnp.concatenate([_reorder_gates(params["wih_f"].T, 1),
                                _reorder_gates(params["wih_b"].T, 1)],
                               axis=1).astype(jnp.bfloat16),                        # (E, 8H) bf16
        "whh_f": _reorder_gates(params["whh_f"].T, 1).astype(jnp.bfloat16),         # (H, 4H) bf16
        "whh_b": _reorder_gates(params["whh_b"].T, 1).astype(jnp.bfloat16),         # (H, 4H) bf16
        "b": jnp.concatenate([_reorder_gates(params["b_f"], 1),
                              _reorder_gates(params["b_b"], 1)], axis=1),           # (1, 8H) f32
        "fc_w": jnp.tile(params["fc_w"].T, (1, 128)),                               # (2H, 128) f32
        "fc_b": jnp.tile(params["fc_b"], (1, 128)),                                 # (1, 128) f32
    }


# --------------------------------------------------------------------------------------
# Forward wrapper
# --------------------------------------------------------------------------------------
@functools.partial(jax.jit, static_argnames=("time_chunk", "batch_tile"))
def sentiment_forward(token_ids, fused, *, time_chunk=4, batch_tile=8):
    """token_ids: (B, T) int32 -> (B, 1) float32 probabilities."""
    B, T = token_ids.shape
    emb = fused["embedding"]
    E = emb.shape[1]
    H = fused["whh_f"].shape[0]
    H4, H8 = 4 * H, 8 * H

    assert T % time_chunk == 0, "T must be divisible by time_chunk"
    assert B % batch_tile == 0 and batch_tile % 8 == 0, "batch_tile must divide B, multiple of 8"
    nt = T // time_chunk
    nb = B // batch_tile

    # Embedding gather, time-major, bf16 (table is already bf16 -> no separate convert pass).
    x_flat = jnp.take(emb, token_ids.T, axis=0).reshape(T * B, E)    # (T*B, E) bf16

    # ---- Pass 1: gridded bulk input projection -> (T*B, 8H) bf16 in HBM ----
    rows = time_chunk * B
    proj = pl.pallas_call(
        input_proj_kernel,
        out_shape=jax.ShapeDtypeStruct((T * B, H8), jnp.bfloat16),
        grid=(nt,),
        in_specs=[pl.BlockSpec((rows, E), lambda i: (i, 0)),
                  pl.BlockSpec((E, H8), lambda i: (0, 0)),
                  pl.BlockSpec((1, H8), lambda i: (0, 0))],
        out_specs=pl.BlockSpec((rows, H8), lambda i: (i, 0)),
        compiler_params=pltpu.CompilerParams(
            dimension_semantics=("parallel",), vmem_limit_bytes=_VMEM_LIMIT),
    )(x_flat, fused["wih"], fused["b"])
    gates = proj.reshape(T, B, H8)     # metadata-only reshape (row-major contiguous)

    # ---- Pass 2: streamed recurrence (batch-parallel x time-chunk-serial grid) ----
    out = pl.pallas_call(
        bilstm_kernel,
        out_shape=jax.ShapeDtypeStruct((B, 128), jnp.float32),
        grid=(nb, nt),
        in_specs=[
            # forward gate chunks: time chunk ti, columns [0, 4H)
            pl.BlockSpec((time_chunk, batch_tile, H4), lambda bi, ti: (ti, bi, 0)),
            # backward gate chunks: time-reversed chunk, columns [4H, 8H)
            pl.BlockSpec((time_chunk, batch_tile, H4), lambda bi, ti: (nt - 1 - ti, bi, 1)),
            pl.BlockSpec((H, H4), lambda bi, ti: (0, 0)),
            pl.BlockSpec((H, H4), lambda bi, ti: (0, 0)),
            pl.BlockSpec((2 * H, 128), lambda bi, ti: (0, 0)),
            pl.BlockSpec((1, 128), lambda bi, ti: (0, 0)),
        ],
        out_specs=pl.BlockSpec((batch_tile, 128), lambda bi, ti: (bi, 0)),
        scratch_shapes=[pltpu.VMEM((batch_tile, H), jnp.float32)] * 4,   # h_f, c_f, h_b, c_b
        compiler_params=pltpu.CompilerParams(
            dimension_semantics=("parallel", "arbitrary"),
            vmem_limit_bytes=_VMEM_LIMIT),
    )(gates, gates, fused["whh_f"], fused["whh_b"], fused["fc_w"], fused["fc_b"])

    return out[:, :1]


# --------------------------------------------------------------------------------------
# Synthetic init + pure-JAX reference (torch nn.LSTM semantics, f32)
# --------------------------------------------------------------------------------------
def init_params(key, vocab_size, embedding_dim, hidden_units):
    """Deterministic synthetic init mirroring the module's parameter shapes (PyTorch layout)."""
    E, H = embedding_dim, hidden_units
    k = jax.random.split(key, 10)
    s = 1.0 / jnp.sqrt(jnp.float32(H))
    u = lambda kk, shape: jax.random.uniform(kk, shape, jnp.float32, -s, s)
    return {
        "embedding": jax.random.normal(k[0], (vocab_size, E), jnp.float32),
        "wih_f": u(k[1], (4 * H, E)),
        "whh_f": u(k[2], (4 * H, H)),
        "b_f":   u(k[3], (1, 4 * H)) + u(k[4], (1, 4 * H)),    # b_ih + b_hh
        "wih_b": u(k[5], (4 * H, E)),
        "whh_b": u(k[6], (4 * H, H)),
        "b_b":   u(k[7], (1, 4 * H)) + u(k[8], (1, 4 * H)),
        "fc_w":  u(k[9], (1, 2 * H)),
        "fc_b":  jnp.zeros((1, 1), jnp.float32),
    }


def reference_forward(token_ids, p):
    """Pure-JAX f32 reference matching torch nn.LSTM(bidirectional=True) semantics."""
    x = jnp.take(p["embedding"], token_ids, axis=0)            # (B, T, E)
    H = p["whh_f"].shape[1]
    B, T, _ = x.shape

    def cell(x_t, h, c, wih, whh, b):
        gates = x_t @ wih.T + h @ whh.T + b
        i = jax.nn.sigmoid(gates[:, :H]); f = jax.nn.sigmoid(gates[:, H:2 * H])
        g = jnp.tanh(gates[:, 2 * H:3 * H]); o = jax.nn.sigmoid(gates[:, 3 * H:])
        c = f * c + i * g
        return o * jnp.tanh(c), c

    h_f = c_f = h_b = c_b = jnp.zeros((B, H), jnp.float32)
    for t in range(T):
        h_f, c_f = cell(x[:, t], h_f, c_f, p["wih_f"], p["whh_f"], p["b_f"])
        h_b, c_b = cell(x[:, T - 1 - t], h_b, c_b, p["wih_b"], p["whh_b"], p["b_b"])
    h_cat = jnp.concatenate([h_f, h_b], axis=1)
    return jax.nn.sigmoid(h_cat @ p["fc_w"].T + p["fc_b"])


if __name__ == "__main__":
    # Small shapes consistent with the module's forward:
    #   token ids (B, T) -> embedding (B, T, E) -> biLSTM hidden H -> fc(2H -> 1) -> sigmoid
    VOCAB = 50
    E = 32         # embedding_dim (small stand-in for 100; pad to a multiple of 128 at prod)
    H = 32         # hidden_units  (small stand-in for 128)
    B, T = 8, 8

    key = jax.random.PRNGKey(0)
    k_tok, k_par = jax.random.split(key)
    token_ids = jax.random.randint(k_tok, (B, T), 0, VOCAB, dtype=jnp.int32)
    raw_params = init_params(k_par, VOCAB, E, H)
    fused = fuse_params(raw_params)

    out = sentiment_forward(token_ids, fused, time_chunk=4, batch_tile=8)
    out = jax.block_until_ready(out)

    assert out.shape == (B, 1) and out.dtype == jnp.float32
    assert bool(jnp.all((out >= 0.0) & (out <= 1.0)))

    ref = reference_forward(token_ids, raw_params)
    max_diff = float(jnp.max(jnp.abs(out - ref)))
    assert max_diff < 5e-2, f"kernel/reference mismatch: {max_diff}"

    print("KERNEL_OK")
</pallas_src>

<mosaic_0001>
module attributes {stable_mosaic.version = 11 : i64} {
  func.func @input_proj_kernel(%arg0: i32, %arg1: memref<32x32xbf16, #tpu.memory_space<vmem>>, %arg2: memref<32x256xbf16, #tpu.memory_space<vmem>>, %arg3: memref<1x256xf32, #tpu.memory_space<vmem>>, %arg4: memref<32x256xbf16, #tpu.memory_space<vmem>>) attributes {dimension_semantics = [#tpu.dimension_semantics<parallel>], iteration_bounds = array<i64: 2>, scalar_prefetch = 0 : i64, scratch_operands = 0 : i64, tpu.core_type = #tpu.core_type<tc>, window_params = [{transform_indices = @transform_0, window_bounds = array<i64: 32, 32>}, {pipeline_mode = #tpu.pipeline_mode<synchronous>, transform_indices = @transform_1, window_bounds = array<i64: 32, 256>}, {pipeline_mode = #tpu.pipeline_mode<synchronous>, transform_indices = @transform_2, window_bounds = array<i64: 1, 256>}, {transform_indices = @transform_3, window_bounds = array<i64: 32, 256>}]} {
    %c0 = arith.constant 0 : index
    %c0_0 = arith.constant 0 : index
    %0 = vector.load %arg1[%c0, %c0_0] : memref<32x32xbf16, #tpu.memory_space<vmem>>, vector<32x32xbf16>
    %c0_1 = arith.constant 0 : index
    %c0_2 = arith.constant 0 : index
    %1 = vector.load %arg2[%c0_1, %c0_2] : memref<32x256xbf16, #tpu.memory_space<vmem>>, vector<32x256xbf16>
    %cst = arith.constant dense<0.000000e+00> : vector<32x256xf32>
    %2 = tpu.matmul %0, %1, %cst {dimension_numbers = #tpu.dot_dimension_numbers<[1], [0], [0], [1], [0, 0, 1, 1], [], []>} : vector<32x32xbf16>, vector<32x256xbf16>, vector<32x256xf32> -> vector<32x256xf32>
    %c0_3 = arith.constant 0 : index
    %c0_4 = arith.constant 0 : index
    %3 = vector.load %arg3[%c0_3, %c0_4] : memref<1x256xf32, #tpu.memory_space<vmem>>, vector<1x256xf32>
    %4 = vector.broadcast %3 : vector<1x256xf32> to vector<32x256xf32>
    %5 = arith.addf %2, %4 : vector<32x256xf32>
    %6 = arith.truncf %5 : vector<32x256xf32> to vector<32x256xbf16>
    %c0_5 = arith.constant 0 : index
    %c0_6 = arith.constant 0 : index
    %7 = vector.load %arg4[%c0_5, %c0_6] : memref<32x256xbf16, #tpu.memory_space<vmem>>, vector<32x256xbf16>
    tpu.vector_store %arg4[%c0_5, %c0_6], %6 {strides = array<i32>} : memref<32x256xbf16, #tpu.memory_space<vmem>>, vector<32x256xbf16>,
    return
  }
  func.func @transform_0(%arg0: i32) -> (i32, i32) {
    %c0_i32 = arith.constant 0 : i32
    %c0_i32_0 = arith.constant 0 : i32
    return %arg0, %c0_i32 : i32, i32
  }
  func.func @transform_1(%arg0: i32) -> (i32, i32) {
    %c0_i32 = arith.constant 0 : i32
    %c0_i32_0 = arith.constant 0 : i32
    %c0_i32_1 = arith.constant 0 : i32
    return %c0_i32, %c0_i32_0 : i32, i32
  }
  func.func @transform_2(%arg0: i32) -> (i32, i32) {
    %c0_i32 = arith.constant 0 : i32
    %c0_i32_0 = arith.constant 0 : i32
    %c0_i32_1 = arith.constant 0 : i32
    return %c0_i32, %c0_i32_0 : i32, i32
  }
  func.func @transform_3(%arg0: i32) -> (i32, i32) {
    %c0_i32 = arith.constant 0 : i32
    %c0_i32_0 = arith.constant 0 : i32
    return %arg0, %c0_i32 : i32, i32
  }
}

module attributes {stable_mosaic.version = 11 : i64} {
  func.func @bilstm_kernel(%arg0: i32, %arg1: i32, %arg2: memref<4x8x128xbf16, #tpu.memory_space<vmem>>, %arg3: memref<4x8x128xbf16, #tpu.memory_space<vmem>>, %arg4: memref<32x128xbf16, #tpu.memory_space<vmem>>, %arg5: memref<32x128xbf16, #tpu.memory_space<vmem>>, %arg6: memref<64x128xf32, #tpu.memory_space<vmem>>, %arg7: memref<1x128xf32, #tpu.memory_space<vmem>>, %arg8: memref<8x128xf32, #tpu.memory_space<vmem>>, %arg9: memref<8x32xf32, #tpu.memory_space<vmem>>, %arg10: memref<8x32xf32, #tpu.memory_space<vmem>>, %arg11: memref<8x32xf32, #tpu.memory_space<vmem>>, %arg12: memref<8x32xf32, #tpu.memory_space<vmem>>) attributes {dimension_semantics = [#tpu.dimension_semantics<parallel>, #tpu.dimension_semantics<arbitrary>], iteration_bounds = array<i64: 1, 2>, scalar_prefetch = 0 : i64, scratch_operands = 4 : i64, tpu.core_type = #tpu.core_type<tc>, window_params = [{transform_indices = @transform_0, window_bounds = array<i64: 4, 8, 128>}, {transform_indices = @transform_1, window_bounds = array<i64: 4, 8, 128>}, {pipeline_mode = #tpu.pipeline_mode<synchronous>, transform_indices = @transform_2, window_bounds = array<i64: 32, 128>}, {pipeline_mode = #tpu.pipeline_mode<synchronous>, transform_indices = @transform_3, window_bounds = array<i64: 32, 128>}, {pipeline_mode = #tpu.pipeline_mode<synchronous>, transform_indices = @transform_4, window_bounds = array<i64: 64, 128>}, {pipeline_mode = #tpu.pipeline_mode<synchronous>, transform_indices = @transform_5, window_bounds = array<i64: 1, 128>}, {transform_indices = @transform_6, window_bounds = array<i64: 8, 128>}]} {
    %c0_i32 = arith.constant 0 : i32
    %0 = arith.cmpi eq, %arg1, %c0_i32 : i32
    %1 = arith.extui %0 : i1 to i32
    %c0_i32_0 = arith.constant 0 : i32
    %2 = arith.cmpi ne, %1, %c0_i32_0 : i32
    scf.if %2 {
      %cst_58 = arith.constant 0.000000e+00 : f32
      %204 = vector.broadcast %cst_58 : f32 to vector<8x32xf32>
      %c0_59 = arith.constant 0 : index
      %c0_60 = arith.constant 0 : index
      %205 = vector.load %arg9[%c0_59, %c0_60] : memref<8x32xf32, #tpu.memory_space<vmem>>, vector<8x32xf32>
      tpu.vector_store %arg9[%c0_59, %c0_60], %204 {strides = array<i32>} : memref<8x32xf32, #tpu.memory_space<vmem>>, vector<8x32xf32>,
      %cst_61 = arith.constant 0.000000e+00 : f32
      %206 = vector.broadcast %cst_61 : f32 to vector<8x32xf32>
      %c0_62 = arith.constant 0 : index
      %c0_63 = arith.constant 0 : index
      %207 = vector.load %arg10[%c0_62, %c0_63] : memref<8x32xf32, #tpu.memory_space<vmem>>, vector<8x32xf32>
      tpu.vector_store %arg10[%c0_62, %c0_63], %206 {strides = array<i32>} : memref<8x32xf32, #tpu.memory_space<vmem>>, vector<8x32xf32>,
      %cst_64 = arith.constant 0.000000e+00 : f32
      %208 = vector.broadcast %cst_64 : f32 to vector<8x32xf32>
      %c0_65 = arith.constant 0 : index
      %c0_66 = arith.constant 0 : index
      %209 = vector.load %arg11[%c0_65, %c0_66] : memref<8x32xf32, #tpu.memory_space<vmem>>, vector<8x32xf32>
      tpu.vector_store %arg11[%c0_65, %c0_66], %208 {strides = array<i32>} : memref<8x32xf32, #tpu.memory_space<vmem>>, vector<8x32xf32>,
      %cst_67 = arith.constant 0.000000e+00 : f32
      %210 = vector.broadcast %cst_67 : f32 to vector<8x32xf32>
      %c0_68 = arith.constant 0 : index
      %c0_69 = arith.constant 0 : index
      %211 = vector.load %arg12[%c0_68, %c0_69] : memref<8x32xf32, #tpu.memory_space<vmem>>, vector<8x32xf32>
      tpu.vector_store %arg12[%c0_68, %c0_69], %210 {strides = array<i32>} : memref<8x32xf32, #tpu.memory_space<vmem>>, vector<8x32xf32>,
    } else {
    }
    %c0 = arith.constant 0 : index
    %c0_1 = arith.constant 0 : index
    %3 = vector.load %arg4[%c0, %c0_1] : memref<32x128xbf16, #tpu.memory_space<vmem>>, vector<32x128xbf16>
    %c0_2 = arith.constant 0 : index
    %c0_3 = arith.constant 0 : index
    %4 = vector.load %arg5[%c0_2, %c0_3] : memref<32x128xbf16, #tpu.memory_space<vmem>>, vector<32x128xbf16>
    %c0_4 = arith.constant 0 : index
    %c0_5 = arith.constant 0 : index
    %5 = vector.load %arg9[%c0_4, %c0_5] : memref<8x32xf32, #tpu.memory_space<vmem>>, vector<8x32xf32>
    %c0_6 = arith.constant 0 : index
    %c0_7 = arith.constant 0 : index
    %6 = vector.load %arg10[%c0_6, %c0_7] : memref<8x32xf32, #tpu.memory_space<vmem>>, vector<8x32xf32>
    %c0_8 = arith.constant 0 : index
    %c0_9 = arith.constant 0 : index
    %7 = vector.load %arg11[%c0_8, %c0_9] : memref<8x32xf32, #tpu.memory_space<vmem>>, vector<8x32xf32>
    %c0_10 = arith.constant 0 : index
    %c0_11 = arith.constant 0 : index
    %8 = vector.load %arg12[%c0_10, %c0_11] : memref<8x32xf32, #tpu.memory_space<vmem>>, vector<8x32xf32>
    %c0_i32_12 = arith.constant 0 : i32
    %9 = arith.index_cast %c0_i32_12 : i32 to index
    %c0_13 = arith.constant 0 : index
    %c0_14 = arith.constant 0 : index
    %10 = vector.load %arg2[%9, %c0_13, %c0_14] : memref<4x8x128xbf16, #tpu.memory_space<vmem>>, vector<1x8x128xbf16>
    %11 = vector.shape_cast %10 : vector<1x8x128xbf16> to vector<8x128xbf16>
    %12 = arith.extf %11 : vector<8x128xbf16> to vector<8x128xf32>
    %13 = arith.truncf %5 : vector<8x32xf32> to vector<8x32xbf16>
    %cst = arith.constant dense<0.000000e+00> : vector<8x128xf32>
    %14 = tpu.matmul %13, %3, %cst {dimension_numbers = #tpu.dot_dimension_numbers<[1], [0], [0], [1], [0, 0, 1, 1], [], []>} : vector<8x32xbf16>, vector<32x128xbf16>, vector<8x128xf32> -> vector<8x128xf32>
    %15 = arith.addf %12, %14 : vector<8x128xf32>
    %c3_i32 = arith.constant 3 : i32
    %16 = arith.subi %c3_i32, %c0_i32_12 : i32
    %17 = arith.index_cast %16 : i32 to index
    %c0_15 = arith.constant 0 : index
    %c0_16 = arith.constant 0 : index
    %18 = vector.load %arg3[%17, %c0_15, %c0_16] : memref<4x8x128xbf16, #tpu.memory_space<vmem>>, vector<1x8x128xbf16>
    %19 = vector.shape_cast %18 : vector<1x8x128xbf16> to vector<8x128xbf16>
    %20 = arith.extf %19 : vector<8x128xbf16> to vector<8x128xf32>
    %21 = arith.truncf %7 : vector<8x32xf32> to vector<8x32xbf16>
    %cst_17 = arith.constant dense<0.000000e+00> : vector<8x128xf32>
    %22 = tpu.matmul %21, %4, %cst_17 {dimension_numbers = #tpu.dot_dimension_numbers<[1], [0], [0], [1], [0, 0, 1, 1], [], []>} : vector<8x32xbf16>, vector<32x128xbf16>, vector<8x128xf32> -> vector<8x128xf32>
    %23 = arith.addf %20, %22 : vector<8x128xf32>
    %24 = vector.extract_strided_slice %15 {offsets = [0, 0], sizes = [8, 96], strides = [1, 1]} : vector<8x128xf32> to vector<8x96xf32>
    %25 = arith.negf %24 : vector<8x96xf32>
    %26 = math.exp %25 : vector<8x96xf32>
    %cst_18 = arith.constant 1.000000e+00 : f32
    %27 = vector.broadcast %cst_18 : f32 to vector<8x96xf32>
    %28 = arith.addf %27, %26 : vector<8x96xf32>
    %29 = arith.divf %27, %28 : vector<8x96xf32>
    %30 = vector.extract_strided_slice %15 {offsets = [0, 96], sizes = [8, 32], strides = [1, 1]} : vector<8x128xf32> to vector<8x32xf32>
    %31 = math.tanh %30 : vector<8x32xf32>
    %32 = vector.extract_strided_slice %29 {offsets = [0, 0], sizes = [8, 32], strides = [1, 1]} : vector<8x96xf32> to vector<8x32xf32>
    %33 = vector.extract_strided_slice %29 {offsets = [0, 32], sizes = [8, 32], strides = [1, 1]} : vector<8x96xf32> to vector<8x32xf32>
    %34 = vector.extract_strided_slice %29 {offsets = [0, 64], sizes = [8, 32], strides = [1, 1]} : vector<8x96xf32> to vector<8x32xf32>
    %35 = arith.mulf %33, %6 : vector<8x32xf32>
    %36 = arith.mulf %32, %31 : vector<8x32xf32>
    %37 = arith.addf %35, %36 : vector<8x32xf32>
    %38 = math.tanh %37 : vector<8x32xf32>
    %39 = arith.mulf %34, %38 : vector<8x32xf32>
    %40 = vector.extract_strided_slice %23 {offsets = [0, 0], sizes = [8, 96], strides = [1, 1]} : vector<8x128xf32> to vector<8x96xf32>
    %41 = arith.negf %40 : vector<8x96xf32>
    %42 = math.exp %41 : vector<8x96xf32>
    %cst_19 = arith.constant 1.000000e+00 : f32
    %43 = vector.broadcast %cst_19 : f32 to vector<8x96xf32>
    %44 = arith.addf %43, %42 : vector<8x96xf32>
    %45 = arith.divf %43, %44 : vector<8x96xf32>
    %46 = vector.extract_strided_slice %23 {offsets = [0, 96], sizes = [8, 32], strides = [1, 1]} : vector<8x128xf32> to vector<8x32xf32>
    %47 = math.tanh %46 : vector<8x32xf32>
    %48 = vector.extract_strided_slice %45 {offsets = [0, 0], sizes = [8, 32], strides = [1, 1]} : vector<8x96xf32> to vector<8x32xf32>
    %49 = vector.extract_strided_slice %45 {offsets = [0, 32], sizes = [8, 32], strides = [1, 1]} : vector<8x96xf32> to vector<8x32xf32>
    %50 = vector.extract_strided_slice %45 {offsets = [0, 64], sizes = [8, 32], strides = [1, 1]} : vector<8x96xf32> to vector<8x32xf32>
    %51 = arith.mulf %49, %8 : vector<8x32xf32>
    %52 = arith.mulf %48, %47 : vector<8x32xf32>
    %53 = arith.addf %51, %52 : vector<8x32xf32>
    %54 = math.tanh %53 : vector<8x32xf32>
    %55 = arith.mulf %50, %54 : vector<8x32xf32>
    %c1_i32 = arith.constant 1 : i32
    %56 = arith.index_cast %c1_i32 : i32 to index
    %c0_20 = arith.constant 0 : index
    %c0_21 = arith.constant 0 : index
    %57 = vector.load %arg2[%56, %c0_20, %c0_21] : memref<4x8x128xbf16, #tpu.memory_space<vmem>>, vector<1x8x128xbf16>
    %58 = vector.shape_cast %57 : vector<1x8x128xbf16> to vector<8x128xbf16>
    %59 = arith.extf %58 : vector<8x128xbf16> to vector<8x128xf32>
    %60 = arith.truncf %39 : vector<8x32xf32> to vector<8x32xbf16>
    %cst_22 = arith.constant dense<0.000000e+00> : vector<8x128xf32>
    %61 = tpu.matmul %60, %3, %cst_22 {dimension_numbers = #tpu.dot_dimension_numbers<[1], [0], [0], [1], [0, 0, 1, 1], [], []>} : vector<8x32xbf16>, vector<32x128xbf16>, vector<8x128xf32> -> vector<8x128xf32>
    %62 = arith.addf %59, %61 : vector<8x128xf32>
    %c3_i32_23 = arith.constant 3 : i32
    %63 = arith.subi %c3_i32_23, %c1_i32 : i32
    %64 = arith.index_cast %63 : i32 to index
    %c0_24 = arith.constant 0 : index
    %c0_25 = arith.constant 0 : index
    %65 = vector.load %arg3[%64, %c0_24, %c0_25] : memref<4x8x128xbf16, #tpu.memory_space<vmem>>, vector<1x8x128xbf16>
    %66 = vector.shape_cast %65 : vector<1x8x128xbf16> to vector<8x128xbf16>
    %67 = arith.extf %66 : vector<8x128xbf16> to vector<8x128xf32>
    %68 = arith.truncf %55 : vector<8x32xf32> to vector<8x32xbf16>
    %cst_26 = arith.constant dense<0.000000e+00> : vector<8x128xf32>
    %69 = tpu.matmul %68, %4, %cst_26 {dimension_numbers = #tpu.dot_dimension_numbers<[1], [0], [0], [1], [0, 0, 1, 1], [], []>} : vector<8x32xbf16>, vector<32x128xbf16>, vector<8x128xf32> -> vector<8x128xf32>
    %70 = arith.addf %67, %69 : vector<8x128xf32>
    %71 = vector.extract_strided_slice %62 {offsets = [0, 0], sizes = [8, 96], strides = [1, 1]} : vector<8x128xf32> to vector<8x96xf32>
    %72 = arith.negf %71 : vector<8x96xf32>
    %73 = math.exp %72 : vector<8x96xf32>
    %cst_27 = arith.constant 1.000000e+00 : f32
    %74 = vector.broadcast %cst_27 : f32 to vector<8x96xf32>
    %75 = arith.addf %74, %73 : vector<8x96xf32>
    %76 = arith.divf %74, %75 : vector<8x96xf32>
    %77 = vector.extract_strided_slice %62 {offsets = [0, 96], sizes = [8, 32], strides = [1, 1]} : vector<8x128xf32> to vector<8x32xf32>
    %78 = math.tanh %77 : vector<8x32xf32>
    %79 = vector.extract_strided_slice %76 {offsets = [0, 0], sizes = [8, 32], strides = [1, 1]} : vector<8x96xf32> to vector<8x32xf32>
    %80 = vector.extract_strided_slice %76 {offsets = [0, 32], sizes = [8, 32], strides = [1, 1]} : vector<8x96xf32> to vector<8x32xf32>
    %81 = vector.extract_strided_slice %76 {offsets = [0, 64], sizes = [8, 32], strides = [1, 1]} : vector<8x96xf32> to vector<8x32xf32>
    %82 = arith.mulf %80, %37 : vector<8x32xf32>
    %83 = arith.mulf %79, %78 : vector<8x32xf32>
    %84 = arith.addf %82, %83 : vector<8x32xf32>
    %85 = math.tanh %84 : vector<8x32xf32>
    %86 = arith.mulf %81, %85 : vector<8x32xf32>
    %87 = vector.extract_strided_slice %70 {offsets = [0, 0], sizes = [8, 96], strides = [1, 1]} : vector<8x128xf32> to vector<8x96xf32>
    %88 = arith.negf %87 : vector<8x96xf32>
    %89 = math.exp %88 : vector<8x96xf32>
    %cst_28 = arith.constant 1.000000e+00 : f32
    %90 = vector.broadcast %cst_28 : f32 to vector<8x96xf32>
    %91 = arith.addf %90, %89 : vector<8x96xf32>
    %92 = arith.divf %90, %91 : vector<8x96xf32>
    %93 = vector.extract_strided_slice %70 {offsets = [0, 96], sizes = [8, 32], strides = [1, 1]} : vector<8x128xf32> to vector<8x32xf32>
    %94 = math.tanh %93 : vector<8x32xf32>
    %95 = vector.extract_strided_slice %92 {offsets = [0, 0], sizes = [8, 32], strides = [1, 1]} : vector<8x96xf32> to vector<8x32xf32>
    %96 = vector.extract_strided_slice %92 {offsets = [0, 32], sizes = [8, 32], strides = [1, 1]} : vector<8x96xf32> to vector<8x32xf32>
    %97 = vector.extract_strided_slice %92 {offsets = [0, 64], sizes = [8, 32], strides = [1, 1]} : vector<8x96xf32> to vector<8x32xf32>
    %98 = arith.mulf %96, %53 : vector<8x32xf32>
    %99 = arith.mulf %95, %94 : vector<8x32xf32>
    %100 = arith.addf %98, %99 : vector<8x32xf32>
    %101 = math.tanh %100 : vector<8x32xf32>
    %102 = arith.mulf %97, %101 : vector<8x32xf32>
    %c2_i32 = arith.constant 2 : i32
    %103 = arith.index_cast %c2_i32 : i32 to index
    %c0_29 = arith.constant 0 : index
    %c0_30 = arith.constant 0 : index
    %104 = vector.load %arg2[%103, %c0_29, %c0_30] : memref<4x8x128xbf16, #tpu.memory_space<vmem>>, vector<1x8x128xbf16>
    %105 = vector.shape_cast %104 : vector<1x8x128xbf16> to vector<8x128xbf16>
    %106 = arith.extf %105 : vector<8x128xbf16> to vector<8x128xf32>
    %107 = arith.truncf %86 : vector<8x32xf32> to vector<8x32xbf16>
    %cst_31 = arith.constant dense<0.000000e+00> : vector<8x128xf32>
    %108 = tpu.matmul %107, %3, %cst_31 {dimension_numbers = #tpu.dot_dimension_numbers<[1], [0], [0], [1], [0, 0, 1, 1], [], []>} : vector<8x32xbf16>, vector<32x128xbf16>, vector<8x128xf32> -> vector<8x128xf32>
    %109 = arith.addf %106, %108 : vector<8x128xf32>
    %c3_i32_32 = arith.constant 3 : i32
    %110 = arith.subi %c3_i32_32, %c2_i32 : i32
    %111 = arith.index_cast %110 : i32 to index
    %c0_33 = arith.constant 0 : index
    %c0_34 = arith.constant 0 : index
    %112 = vector.load %arg3[%111, %c0_33, %c0_34] : memref<4x8x128xbf16, #tpu.memory_space<vmem>>, vector<1x8x128xbf16>
    %113 = vector.shape_cast %112 : vector<1x8x128xbf16> to vector<8x128xbf16>
    %114 = arith.extf %113 : vector<8x128xbf16> to vector<8x128xf32>
    %115 = arith.truncf %102 : vector<8x32xf32> to vector<8x32xbf16>
    %cst_35 = arith.constant dense<0.000000e+00> : vector<8x128xf32>
    %116 = tpu.matmul %115, %4, %cst_35 {dimension_numbers = #tpu.dot_dimension_numbers<[1], [0], [0], [1], [0, 0, 1, 1], [], []>} : vector<8x32xbf16>, vector<32x128xbf16>, vector<8x128xf32> -> vector<8x128xf32>
    %117 = arith.addf %114, %116 : vector<8x128xf32>
    %118 = vector.extract_strided_slice %109 {offsets = [0, 0], sizes = [8, 96], strides = [1, 1]} : vector<8x128xf32> to vector<8x96xf32>
    %119 = arith.negf %118 : vector<8x96xf32>
    %120 = math.exp %119 : vector<8x96xf32>
    %cst_36 = arith.constant 1.000000e+00 : f32
    %121 = vector.broadcast %cst_36 : f32 to vector<8x96xf32>
    %122 = arith.addf %121, %120 : vector<8x96xf32>
    %123 = arith.divf %121, %122 : vector<8x96xf32>
    %124 = vector.extract_strided_slice %109 {offsets = [0, 96], sizes = [8, 32], strides = [1, 1]} : vector<8x128xf32> to vector<8x32xf32>
    %125 = math.tanh %124 : vector<8x32xf32>
    %126 = vector.extract_strided_slice %123 {offsets = [0, 0], sizes = [8, 32], strides = [1, 1]} : vector<8x96xf32> to vector<8x32xf32>
    %127 = vector.extract_strided_slice %123 {offsets = [0, 32], sizes = [8, 32], strides = [1, 1]} : vector<8x96xf32> to vector<8x32xf32>
    %128 = vector.extract_strided_slice %123 {offsets = [0, 64], sizes = [8, 32], strides = [1, 1]} : vector<8x96xf32> to vector<8x32xf32>
    %129 = arith.mulf %127, %84 : vector<8x32xf32>
    %130 = arith.mulf %126, %125 : vector<8x32xf32>
    %131 = arith.addf %129, %130 : vector<8x32xf32>
    %132 = math.tanh %131 : vector<8x32xf32>
    %133 = arith.mulf %128, %132 : vector<8x32xf32>
    %134 = vector.extract_strided_slice %117 {offsets = [0, 0], sizes = [8, 96], strides = [1, 1]} : vector<8x128xf32> to vector<8x96xf32>
    %135 = arith.negf %134 : vector<8x96xf32>
    %136 = math.exp %135 : vector<8x96xf32>
    %cst_37 = arith.constant 1.000000e+00 : f32
    %137 = vector.broadcast %cst_37 : f32 to vector<8x96xf32>
    %138 = arith.addf %137, %136 : vector<8x96xf32>
    %139 = arith.divf %137, %138 : vector<8x96xf32>
    %140 = vector.extract_strided_slice %117 {offsets = [0, 96], sizes = [8, 32], strides = [1, 1]} : vector<8x128xf32> to vector<8x32xf32>
    %141 = math.tanh %140 : vector<8x32xf32>
    %142 = vector.extract_strided_slice %139 {offsets = [0, 0], sizes = [8, 32], strides = [1, 1]} : vector<8x96xf32> to vector<8x32xf32>
    %143 = vector.extract_strided_slice %139 {offsets = [0, 32], sizes = [8, 32], strides = [1, 1]} : vector<8x96xf32> to vector<8x32xf32>
    %144 = vector.extract_strided_slice %139 {offsets = [0, 64], sizes = [8, 32], strides = [1, 1]} : vector<8x96xf32> to vector<8x32xf32>
    %145 = arith.mulf %143, %100 : vector<8x32xf32>
    %146 = arith.mulf %142, %141 : vector<8x32xf32>
    %147 = arith.addf %145, %146 : vector<8x32xf32>
    %148 = math.tanh %147 : vector<8x32xf32>
    %149 = arith.mulf %144, %148 : vector<8x32xf32>
    %c3_i32_38 = arith.constant 3 : i32
    %150 = arith.index_cast %c3_i32_38 : i32 to index
    %c0_39 = arith.constant 0 : index
    %c0_40 = arith.constant 0 : index
    %151 = vector.load %arg2[%150, %c0_39, %c0_40] : memref<4x8x128xbf16, #tpu.memory_space<vmem>>, vector<1x8x128xbf16>
    %152 = vector.shape_cast %151 : vector<1x8x128xbf16> to vector<8x128xbf16>
    %153 = arith.extf %152 : vector<8x128xbf16> to vector<8x128xf32>
    %154 = arith.truncf %133 : vector<8x32xf32> to vector<8x32xbf16>
    %cst_41 = arith.constant dense<0.000000e+00> : vector<8x128xf32>
    %155 = tpu.matmul %154, %3, %cst_41 {dimension_numbers = #tpu.dot_dimension_numbers<[1], [0], [0], [1], [0, 0, 1, 1], [], []>} : vector<8x32xbf16>, vector<32x128xbf16>, vector<8x128xf32> -> vector<8x128xf32>
    %156 = arith.addf %153, %155 : vector<8x128xf32>
    %c3_i32_42 = arith.constant 3 : i32
    %157 = arith.subi %c3_i32_42, %c3_i32_38 : i32
    %158 = arith.index_cast %157 : i32 to index
    %c0_43 = arith.constant 0 : index
    %c0_44 = arith.constant 0 : index
    %159 = vector.load %arg3[%158, %c0_43, %c0_44] : memref<4x8x128xbf16, #tpu.memory_space<vmem>>, vector<1x8x128xbf16>
    %160 = vector.shape_cast %159 : vector<1x8x128xbf16> to vector<8x128xbf16>
    %161 = arith.extf %160 : vector<8x128xbf16> to vector<8x128xf32>
    %162 = arith.truncf %149 : vector<8x32xf32> to vector<8x32xbf16>
    %cst_45 = arith.constant dense<0.000000e+00> : vector<8x128xf32>
    %163 = tpu.matmul %162, %4, %cst_45 {dimension_numbers = #tpu.dot_dimension_numbers<[1], [0], [0], [1], [0, 0, 1, 1], [], []>} : vector<8x32xbf16>, vector<32x128xbf16>, vector<8x128xf32> -> vector<8x128xf32>
    %164 = arith.addf %161, %163 : vector<8x128xf32>
    %165 = vector.extract_strided_slice %156 {offsets = [0, 0], sizes = [8, 96], strides = [1, 1]} : vector<8x128xf32> to vector<8x96xf32>
    %166 = arith.negf %165 : vector<8x96xf32>
    %167 = math.exp %166 : vector<8x96xf32>
    %cst_46 = arith.constant 1.000000e+00 : f32
    %168 = vector.broadcast %cst_46 : f32 to vector<8x96xf32>
    %169 = arith.addf %168, %167 : vector<8x96xf32>
    %170 = arith.divf %168, %169 : vector<8x96xf32>
    %171 = vector.extract_strided_slice %156 {offsets = [0, 96], sizes = [8, 32], strides = [1, 1]} : vector<8x128xf32> to vector<8x32xf32>
    %172 = math.tanh %171 : vector<8x32xf32>
    %173 = vector.extract_strided_slice %170 {offsets = [0, 0], sizes = [8, 32], strides = [1, 1]} : vector<8x96xf32> to vector<8x32xf32>
    %174 = vector.extract_strided_slice %170 {offsets = [0, 32], sizes = [8, 32], strides = [1, 1]} : vector<8x96xf32> to vector<8x32xf32>
    %175 = vector.extract_strided_slice %170 {offsets = [0, 64], sizes = [8, 32], strides = [1, 1]} : vector<8x96xf32> to vector<8x32xf32>
    %176 = arith.mulf %174, %131 : vector<8x32xf32>
    %177 = arith.mulf %173, %172 : vector<8x32xf32>
    %178 = arith.addf %176, %177 : vector<8x32xf32>
    %179 = math.tanh %178 : vector<8x32xf32>
    %180 = arith.mulf %175, %179 : vector<8x32xf32>
    %181 = vector.extract_strided_slice %164 {offsets = [0, 0], sizes = [8, 96], strides = [1, 1]} : vector<8x128xf32> to vector<8x96xf32>
    %182 = arith.negf %181 : vector<8x96xf32>
    %183 = math.exp %182 : vector<8x96xf32>
    %cst_47 = arith.constant 1.000000e+00 : f32
    %184 = vector.broadcast %cst_47 : f32 to vector<8x96xf32>
    %185 = arith.addf %184, %183 : vector<8x96xf32>
    %186 = arith.divf %184, %185 : vector<8x96xf32>
    %187 = vector.extract_strided_slice %164 {offsets = [0, 96], sizes = [8, 32], strides = [1, 1]} : vector<8x128xf32> to vector<8x32xf32>
    %188 = math.tanh %187 : vector<8x32xf32>
    %189 = vector.extract_strided_slice %186 {offsets = [0, 0], sizes = [8, 32], strides = [1, 1]} : vector<8x96xf32> to vector<8x32xf32>
    %190 = vector.extract_strided_slice %186 {offsets = [0, 32], sizes = [8, 32], strides = [1, 1]} : vector<8x96xf32> to vector<8x32xf32>
    %191 = vector.extract_strided_slice %186 {offsets = [0, 64], sizes = [8, 32], strides = [1, 1]} : vector<8x96xf32> to vector<8x32xf32>
    %192 = arith.mulf %190, %147 : vector<8x32xf32>
    %193 = arith.mulf %189, %188 : vector<8x32xf32>
    %194 = arith.addf %192, %193 : vector<8x32xf32>
    %195 = math.tanh %194 : vector<8x32xf32>
    %196 = arith.mulf %191, %195 : vector<8x32xf32>
    %c4_i32 = arith.constant 4 : i32
    %c0_48 = arith.constant 0 : index
    %c0_49 = arith.constant 0 : index
    %197 = vector.load %arg9[%c0_48, %c0_49] : memref<8x32xf32, #tpu.memory_space<vmem>>, vector<8x32xf32>
    tpu.vector_store %arg9[%c0_48, %c0_49], %180 {strides = array<i32>} : memref<8x32xf32, #tpu.memory_space<vmem>>, vector<8x32xf32>,
    %c0_50 = arith.constant 0 : index
    %c0_51 = arith.constant 0 : index
    %198 = vector.load %arg10[%c0_50, %c0_51] : memref<8x32xf32, #tpu.memory_space<vmem>>, vector<8x32xf32>
    tpu.vector_store %arg10[%c0_50, %c0_51], %178 {strides = array<i32>} : memref<8x32xf32, #tpu.memory_space<vmem>>, vector<8x32xf32>,
    %c0_52 = arith.constant 0 : index
    %c0_53 = arith.constant 0 : index
    %199 = vector.load %arg11[%c0_52, %c0_53] : memref<8x32xf32, #tpu.memory_space<vmem>>, vector<8x32xf32>
    tpu.vector_store %arg11[%c0_52, %c0_53], %196 {strides = array<i32>} : memref<8x32xf32, #tpu.memory_space<vmem>>, vector<8x32xf32>,
    %c0_54 = arith.constant 0 : index
    %c0_55 = arith.constant 0 : index
    %200 = vector.load %arg12[%c0_54, %c0_55] : memref<8x32xf32, #tpu.memory_space<vmem>>, vector<8x32xf32>
    tpu.vector_store %arg12[%c0_54, %c0_55], %194 {strides = array<i32>} : memref<8x32xf32, #tpu.memory_space<vmem>>, vector<8x32xf32>,
    %c1_i32_56 = arith.constant 1 : i32
    %201 = arith.cmpi eq, %arg1, %c1_i32_56 : i32
    %202 = arith.extui %201 : i1 to i32
    %c0_i32_57 = arith.constant 0 : i32
    %203 = arith.cmpi ne, %202, %c0_i32_57 : i32
    scf.if %203 {
      %204 = tpu.concatenate %180, %196 in 1 : vector<8x32xf32>, vector<8x32xf32> -> vector<8x64xf32>
      %c0_58 = arith.constant 0 : index
      %c0_59 = arith.constant 0 : index
      %205 = vector.load %arg6[%c0_58, %c0_59] : memref<64x128xf32, #tpu.memory_space<vmem>>, vector<64x128xf32>
      %cst_60 = arith.constant dense<0.000000e+00> : vector<8x128xf32>
      %206 = tpu.matmul %204, %205, %cst_60 {dimension_numbers = #tpu.dot_dimension_numbers<[1], [0], [0], [1], [0, 0, 1, 1], [], []>} : vector<8x64xf32>, vector<64x128xf32>, vector<8x128xf32> -> vector<8x128xf32>
      %c0_61 = arith.constant 0 : index
      %c0_62 = arith.constant 0 : index
      %207 = vector.load %arg7[%c0_61, %c0_62] : memref<1x128xf32, #tpu.memory_space<vmem>>, vector<1x128xf32>
      %208 = vector.broadcast %207 : vector<1x128xf32> to vector<8x128xf32>
      %209 = arith.addf %206, %208 : vector<8x128xf32>
      %210 = arith.negf %209 : vector<8x128xf32>
      %211 = math.exp %210 : vector<8x128xf32>
      %cst_63 = arith.constant 1.000000e+00 : f32
      %212 = vector.broadcast %cst_63 : f32 to vector<8x128xf32>
      %213 = arith.addf %212, %211 : vector<8x128xf32>
      %214 = arith.divf %212, %213 : vector<8x128xf32>
      %c0_64 = arith.constant 0 : index
      %c0_65 = arith.constant 0 : index
      %215 = vector.load %arg8[%c0_64, %c0_65] : memref<8x128xf32, #tpu.memory_space<vmem>>, vector<8x128xf32>
      tpu.vector_store %arg8[%c0_64, %c0_65], %214 {strides = array<i32>} : memref<8x128xf32, #tpu.memory_space<vmem>>, vector<8x128xf32>,
    } else {
    }
    return
  }
  func.func @transform_0(%arg0: i32, %arg1: i32) -> (i32, i32, i32) {
    %c0_i32 = arith.constant 0 : i32
    %c0_i32_0 = arith.constant 0 : i32
    return %arg1, %arg0, %c0_i32 : i32, i32, i32
  }
  func.func @transform_1(%arg0: i32, %arg1: i32) -> (i32, i32, i32) {
    %c1_i32 = arith.constant 1 : i32
    %0 = arith.subi %c1_i32, %arg1 : i32
    %c1_i32_0 = arith.constant 1 : i32
    %c0_i32 = arith.constant 0 : i32
    return %0, %arg0, %c1_i32_0 : i32, i32, i32
  }
  func.func @transform_2(%arg0: i32, %arg1: i32) -> (i32, i32) {
    %c0_i32 = arith.constant 0 : i32
    %c0_i32_0 = arith.constant 0 : i32
    %c0_i32_1 = arith.constant 0 : i32
    return %c0_i32, %c0_i32_0 : i32, i32
  }
  func.func @transform_3(%arg0: i32, %arg1: i32) -> (i32, i32) {
    %c0_i32 = arith.constant 0 : i32
    %c0_i32_0 = arith.constant 0 : i32
    %c0_i32_1 = arith.constant 0 : i32
    return %c0_i32, %c0_i32_0 : i32, i32
  }
  func.func @transform_4(%arg0: i32, %arg1: i32) -> (i32, i32) {
    %c0_i32 = arith.constant 0 : i32
    %c0_i32_0 = arith.constant 0 : i32
    %c0_i32_1 = arith.constant 0 : i32
    return %c0_i32, %c0_i32_0 : i32, i32
  }
  func.func @transform_5(%arg0: i32, %arg1: i32) -> (i32, i32) {
    %c0_i32 = arith.constant 0 : i32
    %c0_i32_0 = arith.constant 0 : i32
    %c0_i32_1 = arith.constant 0 : i32
    return %c0_i32, %c0_i32_0 : i32, i32
  }
  func.func @transform_6(%arg0: i32, %arg1: i32) -> (i32, i32) {
    %c0_i32 = arith.constant 0 : i32
    %c0_i32_0 = arith.constant 0 : i32
    return %arg0, %c0_i32 : i32, i32
  }
}

</mosaic_0001>

<llo_original>
// kernel: sentiment_forward.2
$region0: #{sentiment_forward.2}
  #allocation0 [shape = 'u32[]', space=smem, size = 0x4, offset = 0x4, fixed_abs, tag = 'smem constant byte address 0x4 - core index']
  #allocation1 [shape = 'u32[144,128]{1,0:T(1,128)}', space=vmem, size = 0x12000, scoped, tag = 'internal scratch']
  %s0 = inlined_call_operand.vmem [shape: bf16[64,32], index: 0, kind: input, shape index: {}]
  %s1 = inlined_call_operand.vmem [shape: bf16[32,256], index: 1, kind: input, shape index: {}]
  %s2 = inlined_call_operand.vmem [shape: f32[1,256], index: 2, kind: input, shape index: {}]
  %s3 = inlined_call_operand.vmem [shape: bf16[64,256], index: 3, kind: output, shape index: {}]
  %s4 = sld [smem:[#allocation0]]
  $region45: #{sentiment_forward.2} parent=0
    _
  %s6 = ssub.s32 1, %s4
  %s7 = scalar_select 0, %s6, %s4
  loop: start=0, step=1, limit=4
  $region2: #{sentiment_forward.2} parent=0 // loop_pre_header
    _
  $region3: #{sentiment_forward.2} parent=0 // loop_header
    %s9 = sphi 0, %s13
    %p10 = scmp.ge.s32.totalorder %s9, 4
    %s19 = sphi 0, %s21
    %s22 = sphi 0, %s19
    %s23 = sphi 0, %s22
    %s39 = sphi 0, %s23
    %s43 = sphi 0, %s43
    %s45 = sphi 0, %s43
    %s46 = sphi 0, %s45
    %s60 = sphi 0, %s46
    %s64 = sphi 0, %s64
    %s66 = sphi 0, %s64
    %s67 = sphi 0, %s66
    %s81 = sphi 0, %s67
    %s87 = sphi 0, %s89
    %s90 = sphi 0, %s87
    %s91 = sphi 0, %s90
    %s107 = sphi 0, %s91
  $region4: #{sentiment_forward.2} parent=0 // loop_header_branch
    %12 = sbr.rel (%p10) target = $region8
  $region5: #{sentiment_forward.2} parent=0 // loop_body
    %s14 = ssub.s32 %s9, 1
    %s15 = ssub.s32 %s9, 2
    %s16 = sadd.s32 %s9, 1
    %s17 = ssub.s32 %s9, %s16
    %p18 = scmp.eq.s32.totalorder %s17, 0
    %s20 = sadd.s32 %s19, 1
    %s21 = scalar_select %p18, %s19, %s20
    %p24 = pneg %p18
    %p25 = scmp.eq.s32.totalorder %s9, 1
    %p26 = por %p24, %p25
    %p27 = scmp.ne.s32.totalorder %s19, %s22
    %p28 = scmp.eq.s32.totalorder %s9, 0
    %p29 = por %p27, %p28
    %p30 = scmp.ne.s32.totalorder %s19, %s22
    %p31 = scmp.eq.s32.totalorder %s14, 1
    %p32 = por %p30, %p31
    %p33 = scmp.ne.s32.totalorder %s22, %s23
    %p34 = scmp.eq.s32.totalorder %s14, 0
    %p35 = por %p33, %p34
    %p36 = scmp.ne.s32.totalorder %s22, %s23
    %p37 = scmp.eq.s32.totalorder %s15, 1
    %p38 = por %p36, %p37
    %p40 = scmp.ne.s32.totalorder %s23, %s39
    %p41 = scmp.eq.s32.totalorder %s15, 0
    %p42 = por %p40, %p41
    %s44 = sadd.s32 %s43, 1
    %p47 = scmp.eq.s32.totalorder %s9, 1
    %p48 = scmp.ne.s32.totalorder %s43, %s45
    %p49 = scmp.eq.s32.totalorder %s9, 0
    %p50 = por %p48, %p49
    %p51 = scmp.ne.s32.totalorder %s43, %s45
    %p52 = scmp.eq.s32.totalorder %s14, 1
    %p53 = por %p51, %p52
    %p54 = scmp.ne.s32.totalorder %s45, %s46
    %p55 = scmp.eq.s32.totalorder %s14, 0
    %p56 = por %p54, %p55
    %p57 = scmp.ne.s32.totalorder %s45, %s46
    %p58 = scmp.eq.s32.totalorder %s15, 1
    %p59 = por %p57, %p58
    %p61 = scmp.ne.s32.totalorder %s46, %s60
    %p62 = scmp.eq.s32.totalorder %s15, 0
    %p63 = por %p61, %p62
    %s65 = sadd.s32 %s64, 1
    %p68 = scmp.eq.s32.totalorder %s9, 1
    %p69 = scmp.ne.s32.totalorder %s64, %s66
    %p70 = scmp.eq.s32.totalorder %s9, 0
    %p71 = por %p69, %p70
    %p72 = scmp.ne.s32.totalorder %s64, %s66
    %p73 = scmp.eq.s32.totalorder %s14, 1
    %p74 = por %p72, %p73
    %p75 = scmp.ne.s32.totalorder %s66, %s67
    %p76 = scmp.eq.s32.totalorder %s14, 0
    %p77 = por %p75, %p76
    %p78 = scmp.ne.s32.totalorder %s66, %s67
    %p79 = scmp.eq.s32.totalorder %s15, 1
    %p80 = por %p78, %p79
    %p82 = scmp.ne.s32.totalorder %s67, %s81
    %p83 = scmp.eq.s32.totalorder %s15, 0
    %p84 = por %p82, %p83
    %s85 = ssub.s32 %s9, %s16
    %p86 = scmp.eq.s32.totalorder %s85, 0
    %s88 = sadd.s32 %s87, 1
    %s89 = scalar_select %p86, %s87, %s88
    %p92 = pneg %p86
    %p93 = scmp.eq.s32.totalorder %s9, 1
    %p94 = por %p92, %p93
    %p95 = scmp.ne.s32.totalorder %s87, %s90
    %p96 = scmp.eq.s32.totalorder %s9, 0
    %p97 = por %p95, %p96
    %p98 = scmp.ne.s32.totalorder %s87, %s90
    %p99 = scmp.eq.s32.totalorder %s14, 1
    %p100 = por %p98, %p99
    %p101 = scmp.ne.s32.totalorder %s90, %s91
    %p102 = scmp.eq.s32.totalorder %s14, 0
    %p103 = por %p101, %p102
    %p104 = scmp.ne.s32.totalorder %s90, %s91
    %p105 = scmp.eq.s32.totalorder %s15, 1
    %p106 = por %p104, %p105
    %p108 = scmp.ne.s32.totalorder %s91, %s107
    %p109 = scmp.eq.s32.totalorder %s15, 0
    %p110 = por %p108, %p109
    %p111 = scmp.le.s32.totalorder 1, %s9
    %p112 = scmp.lt.s32.totalorder %s9, 3
    %p113 = pnand %p111, %p112
    %p114 = pneg %p113
    // Predicated region
    $region9: #{sentiment_forward.2} parent=5 // pred_check
      _
    $region10: #{sentiment_forward.2} parent=5 // pred_check_branch
      %116 = sbr.rel (%p113) target = $region12
    $region11: #{sentiment_forward.2} parent=5 // pred_region
      %s117 = ssub.s32 %s9, 1
      // Predicated region
      $region13: #{sentiment_forward.2} parent=11 // pred_check
        %p118 = pneg %p56
      $region14: #{sentiment_forward.2} parent=11 // pred_check_branch
        %120 = sbr.rel (%p118) target = $region16
      $region15: #{sentiment_forward.2} parent=11 // pred_region
        _
      $region16: #{sentiment_forward.2} parent=11 // pred_fallthru
        _
      // Predicated region
      $region17: #{sentiment_forward.2} parent=11 // pred_check
        %p121 = pneg %p77
      $region18: #{sentiment_forward.2} parent=11 // pred_check_branch
        %123 = sbr.rel (%p121) target = $region20
      $region19: #{sentiment_forward.2} parent=11 // pred_region
        _
      $region20: #{sentiment_forward.2} parent=11 // pred_fallthru
        _
    $region12: #{sentiment_forward.2} parent=5 // pred_fallthru
      _
    %p124 = scmp.lt.s32.totalorder %s9, 2
    // Predicated region
    $region21: #{sentiment_forward.2} parent=5 // pred_check
      %p125 = pneg %p124
    $region22: #{sentiment_forward.2} parent=5 // pred_check_branch
      %127 = sbr.rel (%p125) target = $region24
    $region23: #{sentiment_forward.2} parent=5 // pred_region
      // Predicated region
      $region25: #{sentiment_forward.2} parent=23 // pred_check
        %p128 = pneg %p29
      $region26: #{sentiment_forward.2} parent=23 // pred_check_branch
        %130 = sbr.rel (%p128) target = $region28
      $region27: #{sentiment_forward.2} parent=23 // pred_region
        %s131 = smul.u32 4, %s9
        %p132 = scmp.lt.s32.totalorder %s131, 7
        %s133 = scalar_select %p132, %s131, 7
        %s134 = smul.addr %s133, 4
        %s135 = scalar_lea.vmem %s0, %s134
        %s136 = smul.u32 4, %s9
      $region28: #{sentiment_forward.2} parent=23 // pred_fallthru
        _
    $region24: #{sentiment_forward.2} parent=5 // pred_fallthru
      _
    %p137 = scmp.le.s32.totalorder 1, %s9
    %p138 = scmp.lt.s32.totalorder %s9, 3
    %p139 = pnand %p137, %p138
    %p140 = pneg %p139
    // Predicated region
    $region29: #{sentiment_forward.2} parent=5 // pred_check
      _
    $region30: #{sentiment_forward.2} parent=5 // pred_check_branch
      %142 = sbr.rel (%p139) target = $region32
    $region31: #{sentiment_forward.2} parent=5 // pred_region
      %s143 = ssub.s32 %s9, 1
      %s144 = smul.u32 4, %s14
      %p145 = scmp.lt.s32.totalorder %s144, 7
      %s146 = scalar_select %p145, %s144, 7
      %s147 = smul.addr %s146, 4
      %s148 = scalar_lea.vmem %s0, %s147
      %p149 = pneg %p35
      %p150 = pneg %p32
      %p151 = pneg %p56
      %p152 = pneg %p53
      %p153 = pneg %p77
      %p154 = pneg %p74
      %p155 = pneg %p103
      %p156 = pneg %p100
      %s157 = smul.u32 4, %s14
      %p158 = scmp.lt.s32.totalorder %s157, 7
      %s159 = scalar_select %p158, %s157, 7
      %s160 = smul.addr %s159, 2
      %s161 = smul.addr %s160, 4
      %s162 = scalar_lea.vmem %s3, %s161
      %s163 = smul.u32 4, %s14
      %p164 = scmp.lt.s32.totalorder %s163, 7
      %s165 = scalar_select %p164, %s163, 7
      %s166 = smul.addr %s165, 4
      %s167 = scalar_lea.vmem %s0, %s166
      %s168 = smul.u32 4, %s14
      %s169 = smul.u32 4, %s14
      %p170 = scmp.lt.s32.totalorder %s169, 7
      %s171 = scalar_select %p170, %s169, 7
      %s172 = smul.addr %s171, 2
      %s173 = smul.addr %s172, 4
      %s174 = scalar_lea.vmem %s3, %s173
      %s175 = smul.u32 4, %s14
      %v177 = vld [vmem:[%s167] sm:$0xf]
      %v178 = vld [vmem:[%s167 + $0x4] sm:$0xf]
      %v179 = vld [vmem:[%s167 + $0x8] sm:$0xf]
      %v180 = vld [vmem:[%s167 + $0xc] sm:$0xf]
      %v181 = vld [vmem:[%s1] sm:$0xff]
      %v182 = vld [vmem:[%s1 + $0x8] sm:$0xff]
      %v183 = vld [vmem:[%s1 + $0x10] sm:$0xff]
      %v184 = vld [vmem:[%s1 + $0x18] sm:$0xff]
      %v185 = vld [vmem:[%s2] sm:$0x3]
      %v187 = vlaneseq
      %v188 = vshrl.u32 %v187, 7
      %v189 = vsub.s32 0, %v188
      %v190 = vrot.slane %v185, %v189
      %v191 = vlaneseq
      %v192 = vshrl.u32 %v191, 7
      %v193 = vsub.s32 1, %v192
      %v194 = vrot.slane %v185, %v193
      %v201 = vunpack.c.l.b16 %v177
      %v202 = vunpack.c.l.b16 %v178
      %v203 = vunpack.c.l.b16 %v179
      %v204 = vunpack.c.l.b16 %v180
      %v205 = vpack.c.b16 %v202, %v201
      %v206 = vpack.c.b16 %v204, %v203
      %v211 = vunpack.c.l.b16 %v181
      %v212 = vunpack.c.h.b16 %v181
      %v213 = vunpack.c.l.b16 %v182
      %v214 = vunpack.c.h.b16 %v182
      %v215 = vunpack.c.l.b16 %v183
      %v216 = vunpack.c.h.b16 %v183
      %v217 = vunpack.c.l.b16 %v184
      %v218 = vunpack.c.h.b16 %v184
      %v219 = vpack.c.b16 %v213, %v211
      %v220 = vpack.c.b16 %v214, %v212
      %v221 = vpack.c.b16 %v217, %v215
      %v222 = vpack.c.b16 %v218, %v216
      %vm227 = vcmask 261120
      %v229 = vsel %vm227, %v205, 0
      %v232 = vsel %vm227, %v206, 0
      %234 = vmatprep.subr.bf16.mxu0 0
      %235 = vmatpush1.bf16.msra.mxu0 0
      %236 = vmatprep.subr.bf16.mxu0 0
      %237 = vmatpush1.bf16.msra.mxu0 0
      %238 = vmatprep.subr.bf16.mxu0 0
      %239 = vmatpush1.bf16.msra.mxu0 0
      %240 = vmatprep.subr.bf16.mxu0 0
      %241 = vmatpush1.bf16.msra.mxu0 0
      %242 = vmatprep.subr.bf16.mxu0 0
      %243 = vmatpush1.bf16.msra.mxu0 0
      %244 = vmatprep.subr.bf16.mxu0 0
      %245 = vmatpush1.bf16.msra.mxu0 0
      %246 = vmatprep.subr.bf16.mxu0 %v222
      %247 = vmatpush1.bf16.msra.mxu0 %v221
      %248 = vmatprep.subr.bf16.mxu0 %v220
      %249 = vmatpush1.bf16.msra.mxu0 %v219
      %250 = vmatprep.subr.bf16.mxu0 0
      %251 = vmatpush2.bf16.msra.mxu0 0
      %252 = vmatprep.subr.bf16.mxu0 0
      %253 = vmatpush2.bf16.msra.mxu0 0
      %254 = vmatprep.subr.bf16.mxu0 0
      %255 = vmatpush2.bf16.msra.mxu0 0
      %256 = vmatprep.subr.bf16.mxu0 0
      %257 = vmatpush2.bf16.msra.mxu0 0
      %258 = vmatprep.subr.bf16.mxu0 0
      %259 = vmatpush2.bf16.msra.mxu0 0
      %260 = vmatprep.subr.bf16.mxu0 0
      %261 = vmatpush2.bf16.msra.mxu0 0
      %262 = vmatprep.subr.bf16.mxu0 0
      %263 = vmatpush2.bf16.msra.mxu0 0
      %264 = vmatprep.subr.bf16.mxu0 0
      %265 = vmatpush2.bf16.msra.mxu0 0
      %266 = vmatprep.mubr.bf16.mxu0 0
      %267 = vmatmul.mubr.bf16.gmra.mxu0 %v229
      %v268 = vpop.f32.mrf.mxu0
      %v269 = vadd.f32 %v190, %v268
      %v270 = vpop.f32.mrf.mxu0
      %v271 = vadd.f32 %v194, %v270
      %v272 = vpop.f32.mrf.mxu0
      %v273 = vadd.f32 %v190, %v272
      %v274 = vpop.f32.mrf.mxu0
      %v275 = vadd.f32 %v194, %v274
      %276 = vmatprep.mubr.bf16.mxu0 0
      %277 = vmatmul.mubr.bf16.gmra.mxu0 %v232
      %v278 = vpop.f32.mrf.mxu0
      %v279 = vadd.f32 %v190, %v278
      %v280 = vpop.f32.mrf.mxu0
      %v281 = vadd.f32 %v194, %v280
      %v282 = vpop.f32.mrf.mxu0
      %v283 = vadd.f32 %v190, %v282
      %v284 = vpop.f32.mrf.mxu0
      %v285 = vadd.f32 %v194, %v284
      %286 = vdwg.mxu0
      %v287 = vpack.c.bf16 %v273, %v269
      %v288 = vpack.c.bf16 %v275, %v271
      %v289 = vpack.c.bf16 %v283, %v279
      %v290 = vpack.c.bf16 %v285, %v281
      %v295 = vunpack.c.l.b16 %v287
      %v296 = vunpack.c.l.b16 %v288
      %v297 = vunpack.c.h.b16 %v287
      %v298 = vunpack.c.h.b16 %v288
      %v299 = vunpack.c.l.b16 %v289
      %v300 = vunpack.c.l.b16 %v290
      %v301 = vunpack.c.h.b16 %v289
      %v302 = vunpack.c.h.b16 %v290
      %v303 = vpack.c.b16 %v296, %v295
      %v304 = vpack.c.b16 %v298, %v297
      %v305 = vpack.c.b16 %v300, %v299
      %v306 = vpack.c.b16 %v302, %v301
      %311 = vst [vmem:[%s174] sm:$0xff] %v303
      %312 = vst [vmem:[%s174 + $0x8] sm:$0xff] %v304
      %313 = vst [vmem:[%s174 + $0x10] sm:$0xff] %v305
      %314 = vst [vmem:[%s174 + $0x18] sm:$0xff] %v306
      %s315 = smul.u32 4, %s14
      %p316 = scmp.lt.s32.totalorder %s315, 7
      %s317 = scalar_select %p316, %s315, 7
      %s318 = smul.addr %s317, 2
      %s319 = smul.addr %s318, 4
      %s320 = scalar_lea.vmem %s3, %s319
      // Predicated region
      $region33: #{sentiment_forward.2} parent=31 // pred_check
        %p321 = pneg %p100
      $region34: #{sentiment_forward.2} parent=31 // pred_check_branch
        %323 = sbr.rel (%p321) target = $region36
      $region35: #{sentiment_forward.2} parent=31 // pred_region
        %s324 = smul.u32 4, %s14
      $region36: #{sentiment_forward.2} parent=31 // pred_fallthru
        _
    $region32: #{sentiment_forward.2} parent=5 // pred_fallthru
      _
    %p325 = scmp.le.s32.totalorder 2, %s9
    // Predicated region
    $region37: #{sentiment_forward.2} parent=5 // pred_check
      %p326 = pneg %p325
    $region38: #{sentiment_forward.2} parent=5 // pred_check_branch
      %328 = sbr.rel (%p326) target = $region40
    $region39: #{sentiment_forward.2} parent=5 // pred_region
      %s329 = ssub.s32 %s9, 2
      // Predicated region
      $region41: #{sentiment_forward.2} parent=39 // pred_check
        %p330 = pneg %p106
      $region42: #{sentiment_forward.2} parent=39 // pred_check_branch
        %332 = sbr.rel (%p330) target = $region44
      $region43: #{sentiment_forward.2} parent=39 // pred_region
        %s333 = smul.u32 4, %s15
        %p334 = scmp.lt.s32.totalorder %s333, 7
        %s335 = scalar_select %p334, %s333, 7
        %s336 = smul.addr %s335, 2
        %s337 = smul.addr %s336, 4
        %s338 = scalar_lea.vmem %s3, %s337
      $region44: #{sentiment_forward.2} parent=39 // pred_fallthru
        _
    $region40: #{sentiment_forward.2} parent=5 // pred_fallthru
      _
  $region6: #{sentiment_forward.2} parent=0 // loop_footer
    %s13 = sadd.s32 1, %s9
  $region7: #{sentiment_forward.2} parent=0 // loop_footer_branch
    %8 = sbr.rel target = $region3
  $region8: #{sentiment_forward.2} parent=0 // loop_exit
    _

// kernel: sentiment_forward.3
$region0: #{sentiment_forward.3}
  #allocation0 [shape = 'u32[]', space=smem, size = 0x4, offset = 0x4, fixed_abs, tag = 'smem constant byte address 0x4 - core index']
  #allocation1 [shape = 'u32[144,128]{1,0:T(1,128)}', space=vmem, size = 0x12000, scoped, tag = 'internal scratch']
  #allocation2 [shape = 'f32[8,32]{1,0:T(8,128)}', space=vmem, size = 0x1000, scoped, tag = 'scratch operand']
  #allocation3 [shape = 'f32[8,32]{1,0:T(8,128)}', space=vmem, size = 0x1000, scoped, tag = 'scratch operand']
  #allocation4 [shape = 'f32[8,32]{1,0:T(8,128)}', space=vmem, size = 0x1000, scoped, tag = 'scratch operand']
  #allocation5 [shape = 'f32[8,32]{1,0:T(8,128)}', space=vmem, size = 0x1000, scoped, tag = 'scratch operand']
  %s0 = inlined_call_operand.vmem [shape: bf16[8,8,256], index: 0, kind: input, shape index: {}, may-alias: {0,1}]
  %s1 = inlined_call_operand.vmem [shape: bf16[8,8,256], index: 1, kind: input, shape index: {}, may-alias: {0,1}]
  %s2 = inlined_call_operand.vmem [shape: bf16[32,128], index: 2, kind: input, shape index: {}]
  %s3 = inlined_call_operand.vmem [shape: bf16[32,128], index: 3, kind: input, shape index: {}]
  %s4 = inlined_call_operand.vmem [shape: f32[64,128], index: 4, kind: input, shape index: {}]
  %s5 = inlined_call_operand.vmem [shape: f32[1,128], index: 5, kind: input, shape index: {}]
  %s6 = inlined_call_operand.vmem [shape: f32[8,128], index: 6, kind: output, shape index: {}]
  %s7 = sld [smem:[#allocation0]]
  $region147: #{sentiment_forward.3} parent=0
    _
  %s9 = ssub.s32 1, %s7
  %s10 = scalar_select 0, %s9, %s7
  $region1: #{sentiment_forward.3} parent=0
    #allocation6 [shape = 'u8[16384]{0}', space=vmem, size = 0x4000, scoped, tag = 'input window, operand 0']
    #allocation7 [shape = 'u8[16384]{0}', space=vmem, size = 0x4000, scoped, tag = 'input window, operand 1']
    loop: start=0, step=1, limit=4
    $region2: #{sentiment_forward.3} parent=1 // loop_pre_header
      _
    $region3: #{sentiment_forward.3} parent=1 // loop_header
      %s12 = sphi 0, %s16
      %p13 = scmp.ge.s32.totalorder %s12, 4
      %s19 = sphi 0, %s31
      %s20 = sphi 0, %s27
      %s21 = sphi 0, %s19
      %s22 = sphi 0, %s20
      %s23 = sphi 0, %s21
      %s24 = sphi 0, %s22
      %s36 = sphi 0, %s38
      %s39 = sphi 0, %s36
      %s40 = sphi 0, %s39
      %s56 = sphi 0, %s40
      %s66 = sphi 0, %s68
      %s69 = sphi 0, %s66
      %s70 = sphi 0, %s69
      %s86 = sphi 0, %s70
      %s90 = sphi 0, %s90
      %s92 = sphi 0, %s90
      %s93 = sphi 0, %s92
      %s107 = sphi 0, %s93
      %s111 = sphi 0, %s111
      %s113 = sphi 0, %s111
      %s114 = sphi 0, %s113
      %s128 = sphi 0, %s114
      %s132 = sphi 0, %s132
      %s134 = sphi 0, %s132
      %s135 = sphi 0, %s134
      %s149 = sphi 0, %s135
      %s153 = sphi 0, %s153
      %s155 = sphi 0, %s153
      %s156 = sphi 0, %s155
      %s170 = sphi 0, %s156
      %s176 = sphi 0, %s178
      %s179 = sphi 0, %s176
      %s180 = sphi 0, %s179
      %s196 = sphi 0, %s180
    $region4: #{sentiment_forward.3} parent=1 // loop_header_branch
      %15 = sbr.rel (%p13) target = $region8
    $region5: #{sentiment_forward.3} parent=1 // loop_body
      %s17 = ssub.s32 %s12, 1
      %s18 = ssub.s32 %s12, 2
      %s25 = sadd.s32 1, %s20
      %p26 = scmp.ge.s32.totalorder %s25, 2
      %s27 = scalar_select %p26, 0, %s25
      %s28 = sadd.s32 1, %s19
      %s29 = scalar_select %p26, %s28, %s19
      %p30 = scmp.ge.s32.totalorder %s29, 1
      %s31 = scalar_select %p30, 0, %s29
      %s32 = ssub.s32 %s20, %s27
      %s33 = ssub.s32 %s19, %s31
      %s34 = sor.u32 %s32, %s33
      %p35 = scmp.eq.s32.totalorder %s34, 0
      %s37 = sadd.s32 %s36, 1
      %s38 = scalar_select %p35, %s36, %s37
      %p41 = pneg %p35
      %p42 = scmp.eq.s32.totalorder %s12, 1
      %p43 = por %p41, %p42
      %p44 = scmp.ne.s32.totalorder %s36, %s39
      %p45 = scmp.eq.s32.totalorder %s12, 0
      %p46 = por %p44, %p45
      %p47 = scmp.ne.s32.totalorder %s36, %s39
      %p48 = scmp.eq.s32.totalorder %s17, 1
      %p49 = por %p47, %p48
      %p50 = scmp.ne.s32.totalorder %s39, %s40
      %p51 = scmp.eq.s32.totalorder %s17, 0
      %p52 = por %p50, %p51
      %p53 = scmp.ne.s32.totalorder %s39, %s40
      %p54 = scmp.eq.s32.totalorder %s18, 1
      %p55 = por %p53, %p54
      %p57 = scmp.ne.s32.totalorder %s40, %s56
      %p58 = scmp.eq.s32.totalorder %s18, 0
      %p59 = por %p57, %p58
      %s60 = ssub.s32 1, %s20
      %s61 = ssub.s32 1, %s27
      %s62 = ssub.s32 %s60, %s61
      %s63 = ssub.s32 %s19, %s31
      %s64 = sor.u32 %s62, %s63
      %p65 = scmp.eq.s32.totalorder %s64, 0
      %s67 = sadd.s32 %s66, 1
      %s68 = scalar_select %p65, %s66, %s67
      %p71 = pneg %p65
      %p72 = scmp.eq.s32.totalorder %s12, 1
      %p73 = por %p71, %p72
      %p74 = scmp.ne.s32.totalorder %s66, %s69
      %p75 = scmp.eq.s32.totalorder %s12, 0
      %p76 = por %p74, %p75
      %p77 = scmp.ne.s32.totalorder %s66, %s69
      %p78 = scmp.eq.s32.totalorder %s17, 1
      %p79 = por %p77, %p78
      %p80 = scmp.ne.s32.totalorder %s69, %s70
      %p81 = scmp.eq.s32.totalorder %s17, 0
      %p82 = por %p80, %p81
      %p83 = scmp.ne.s32.totalorder %s69, %s70
      %p84 = scmp.eq.s32.totalorder %s18, 1
      %p85 = por %p83, %p84
      %p87 = scmp.ne.s32.totalorder %s70, %s86
      %p88 = scmp.eq.s32.totalorder %s18, 0
      %p89 = por %p87, %p88
      %s91 = sadd.s32 %s90, 1
      %p94 = scmp.eq.s32.totalorder %s12, 1
      %p95 = scmp.ne.s32.totalorder %s90, %s92
      %p96 = scmp.eq.s32.totalorder %s12, 0
      %p97 = por %p95, %p96
      %p98 = scmp.ne.s32.totalorder %s90, %s92
      %p99 = scmp.eq.s32.totalorder %s17, 1
      %p100 = por %p98, %p99
      %p101 = scmp.ne.s32.totalorder %s92, %s93
      %p102 = scmp.eq.s32.totalorder %s17, 0
      %p103 = por %p101, %p102
      %p104 = scmp.ne.s32.totalorder %s92, %s93
      %p105 = scmp.eq.s32.totalorder %s18, 1
      %p106 = por %p104, %p105
      %p108 = scmp.ne.s32.totalorder %s93, %s107
      %p109 = scmp.eq.s32.totalorder %s18, 0
      %p110 = por %p108, %p109
      %s112 = sadd.s32 %s111, 1
      %p115 = scmp.eq.s32.totalorder %s12, 1
      %p116 = scmp.ne.s32.totalorder %s111, %s113
      %p117 = scmp.eq.s32.totalorder %s12, 0
      %p118 = por %p116, %p117
      %p119 = scmp.ne.s32.totalorder %s111, %s113
      %p120 = scmp.eq.s32.totalorder %s17, 1
      %p121 = por %p119, %p120
      %p122 = scmp.ne.s32.totalorder %s113, %s114
      %p123 = scmp.eq.s32.totalorder %s17, 0
      %p124 = por %p122, %p123
      %p125 = scmp.ne.s32.totalorder %s113, %s114
      %p126 = scmp.eq.s32.totalorder %s18, 1
      %p127 = por %p125, %p126
      %p129 = scmp.ne.s32.totalorder %s114, %s128
      %p130 = scmp.eq.s32.totalorder %s18, 0
      %p131 = por %p129, %p130
      %s133 = sadd.s32 %s132, 1
      %p136 = scmp.eq.s32.totalorder %s12, 1
      %p137 = scmp.ne.s32.totalorder %s132, %s134
      %p138 = scmp.eq.s32.totalorder %s12, 0
      %p139 = por %p137, %p138
      %p140 = scmp.ne.s32.totalorder %s132, %s134
      %p141 = scmp.eq.s32.totalorder %s17, 1
      %p142 = por %p140, %p141
      %p143 = scmp.ne.s32.totalorder %s134, %s135
      %p144 = scmp.eq.s32.totalorder %s17, 0
      %p145 = por %p143, %p144
      %p146 = scmp.ne.s32.totalorder %s134, %s135
      %p147 = scmp.eq.s32.totalorder %s18, 1
      %p148 = por %p146, %p147
      %p150 = scmp.ne.s32.totalorder %s135, %s149
      %p151 = scmp.eq.s32.totalorder %s18, 0
      %p152 = por %p150, %p151
      %s154 = sadd.s32 %s153, 1
      %p157 = scmp.eq.s32.totalorder %s12, 1
      %p158 = scmp.ne.s32.totalorder %s153, %s155
      %p159 = scmp.eq.s32.totalorder %s12, 0
      %p160 = por %p158, %p159
      %p161 = scmp.ne.s32.totalorder %s153, %s155
      %p162 = scmp.eq.s32.totalorder %s17, 1
      %p163 = por %p161, %p162
      %p164 = scmp.ne.s32.totalorder %s155, %s156
      %p165 = scmp.eq.s32.totalorder %s17, 0
      %p166 = por %p164, %p165
      %p167 = scmp.ne.s32.totalorder %s155, %s156
      %p168 = scmp.eq.s32.totalorder %s18, 1
      %p169 = por %p167, %p168
      %p171 = scmp.ne.s32.totalorder %s156, %s170
      %p172 = scmp.eq.s32.totalorder %s18, 0
      %p173 = por %p171, %p172
      %s174 = ssub.s32 %s19, %s31
      %p175 = scmp.eq.s32.totalorder %s174, 0
      %s177 = sadd.s32 %s176, 1
      %s178 = scalar_select %p175, %s176, %s177
      %p181 = pneg %p175
      %p182 = scmp.eq.s32.totalorder %s12, 1
      %p183 = por %p181, %p182
      %p184 = scmp.ne.s32.totalorder %s176, %s179
      %p185 = scmp.eq.s32.totalorder %s12, 0
      %p186 = por %p184, %p185
      %p187 = scmp.ne.s32.totalorder %s176, %s179
      %p188 = scmp.eq.s32.totalorder %s17, 1
      %p189 = por %p187, %p188
      %p190 = scmp.ne.s32.totalorder %s179, %s180
      %p191 = scmp.eq.s32.totalorder %s17, 0
      %p192 = por %p190, %p191
      %p193 = scmp.ne.s32.totalorder %s179, %s180
      %p194 = scmp.eq.s32.totalorder %s18, 1
      %p195 = por %p193, %p194
      %p197 = scmp.ne.s32.totalorder %s180, %s196
      %p198 = scmp.eq.s32.totalorder %s18, 0
      %p199 = por %p197, %p198
      %p200 = scmp.le.s32.totalorder 1, %s12
      %p201 = scmp.lt.s32.totalorder %s12, 3
      %p202 = pnand %p200, %p201
      %p203 = pneg %p202
      // Predicated region
      $region9: #{sentiment_forward.3} parent=5 // pred_check
        _
      $region10: #{sentiment_forward.3} parent=5 // pred_check_branch
        %205 = sbr.rel (%p202) target = $region12
      $region11: #{sentiment_forward.3} parent=5 // pred_region
        %s206 = ssub.s32 %s12, 1
        // Predicated region
        $region13: #{sentiment_forward.3} parent=11 // pred_check
          %p207 = pneg %p103
        $region14: #{sentiment_forward.3} parent=11 // pred_check_branch
          %209 = sbr.rel (%p207) target = $region16
        $region15: #{sentiment_forward.3} parent=11 // pred_region
          _
        $region16: #{sentiment_forward.3} parent=11 // pred_fallthru
          _
        // Predicated region
        $region17: #{sentiment_forward.3} parent=11 // pred_check
          %p210 = pneg %p124
        $region18: #{sentiment_forward.3} parent=11 // pred_check_branch
          %212 = sbr.rel (%p210) target = $region20
        $region19: #{sentiment_forward.3} parent=11 // pred_region
          _
        $region20: #{sentiment_forward.3} parent=11 // pred_fallthru
          _
        // Predicated region
        $region21: #{sentiment_forward.3} parent=11 // pred_check
          %p213 = pneg %p145
        $region22: #{sentiment_forward.3} parent=11 // pred_check_branch
          %215 = sbr.rel (%p213) target = $region24
        $region23: #{sentiment_forward.3} parent=11 // pred_region
          _
        $region24: #{sentiment_forward.3} parent=11 // pred_fallthru
          _
        // Predicated region
        $region25: #{sentiment_forward.3} parent=11 // pred_check
          %p216 = pneg %p166
        $region26: #{sentiment_forward.3} parent=11 // pred_check_branch
          %218 = sbr.rel (%p216) target = $region28
        $region27: #{sentiment_forward.3} parent=11 // pred_region
          _
        $region28: #{sentiment_forward.3} parent=11 // pred_fallthru
          _
      $region12: #{sentiment_forward.3} parent=5 // pred_fallthru
        _
      %p219 = scmp.lt.s32.totalorder %s12, 2
      // Predicated region
      $region29: #{sentiment_forward.3} parent=5 // pred_check
        %p220 = pneg %p219
      $region30: #{sentiment_forward.3} parent=5 // pred_check_branch
        %222 = sbr.rel (%p220) target = $region32
      $region31: #{sentiment_forward.3} parent=5 // pred_region
        // Predicated region
        $region33: #{sentiment_forward.3} parent=31 // pred_check
          %p223 = pneg %p46
        $region34: #{sentiment_forward.3} parent=31 // pred_check_branch
          %225 = sbr.rel (%p223) target = $region36
        $region35: #{sentiment_forward.3} parent=31 // pred_region
          %s226 = sand.u32 %s36, 1
          %s227 = sand.u32 %s36, 1
          %s228 = smul.addr %s227, 16
          %s229 = scalar_lea.vmem [#allocation6], %s228
          %s230 = smul.u32 4, %s20
          %s231 = smul.addr %s19, 2
          %s232 = smul.addr %s230, 2
          %s233 = sadd.s32 %s231, %s232
          %s234 = smul.addr %s233, 4
          %s235 = scalar_lea.vmem %s0, %s234
          // Predicated region
          $region37: #{sentiment_forward.3} parent=35 // pred_check
            _
          $region38: #{sentiment_forward.3} parent=35 // pred_check_branch
            %237 = sbr.rel (0) target = $region40
          $region39: #{sentiment_forward.3} parent=35 // pred_region
            // Predicated region
            $region41: #{sentiment_forward.3} parent=39 // pred_check
              _
            $region42: #{sentiment_forward.3} parent=39 // pred_check_branch
              %239 = sbr.rel target = $region44
            $region43: #{sentiment_forward.3} parent=39 // pred_region
              // Predicated region
              $region56: #{sentiment_forward.3} parent=43 // pred_check
                _
              $region57: #{sentiment_forward.3} parent=43 // pred_check_branch
                %261 = sbr.rel (0) target = $region59
              $region58: #{sentiment_forward.3} parent=43 // pred_region
                loop: start=0, step=1, limit=1
                $region60: #{sentiment_forward.3} parent=58 // loop_pre_header
                  _
                $region61: #{sentiment_forward.3} parent=58 // loop_header
                  %s263 = sphi 0, %s267
                  %p264 = scmp.ge.s32.totalorder %s263, 1
                  %s268 = sphi %s235, %s235
                  %s269 = sphi %s229, %s229
                $region62: #{sentiment_forward.3} parent=58 // loop_header_branch
                  %266 = sbr.rel (%p264) target = $region66
                $region63: #{sentiment_forward.3} parent=58 // loop_body
                  _
                $region64: #{sentiment_forward.3} parent=58 // loop_footer
                  %s267 = sadd.s32 1, %s263
                $region65: #{sentiment_forward.3} parent=58 // loop_footer_branch
                  %262 = sbr.rel target = $region61
                $region66: #{sentiment_forward.3} parent=58 // loop_exit
                  _
                %s271 = ssub.s32 16, 1
                loop: start=0, step=1, limit=1
                $region67: #{sentiment_forward.3} parent=58 // loop_pre_header
                  _
                $region68: #{sentiment_forward.3} parent=58 // loop_header
                  %s273 = sphi 0, %s277
                  %p274 = scmp.ge.s32.totalorder %s273, 1
                  %s278 = sphi %s235, %s235
                  %s279 = sphi %s229, %s229
                $region69: #{sentiment_forward.3} parent=58 // loop_header_branch
                  %276 = sbr.rel (%p274) target = $region73
                $region70: #{sentiment_forward.3} parent=58 // loop_body
                  %v280 = vld [vmem:[%s278] sm:%s271]
                  %281 = vst [vmem:[%s279] sm:%s271] %v280
                  %v282 = vld [vmem:[%s278 + $0x8] sm:%s271]
                  %283 = vst [vmem:[%s279 + $0x4] sm:%s271] %v282
                  %v284 = vld [vmem:[%s278 + $0x10] sm:%s271]
                  %285 = vst [vmem:[%s279 + $0x8] sm:%s271] %v284
                  %v286 = vld [vmem:[%s278 + $0x18] sm:%s271]
                  %287 = vst [vmem:[%s279 + $0xc] sm:%s271] %v286
                $region71: #{sentiment_forward.3} parent=58 // loop_footer
                  %s277 = sadd.s32 1, %s273
                $region72: #{sentiment_forward.3} parent=58 // loop_footer_branch
                  %272 = sbr.rel target = $region68
                $region73: #{sentiment_forward.3} parent=58 // loop_exit
                  _
              $region59: #{sentiment_forward.3} parent=43 // pred_fallthru
                _
            $region44: #{sentiment_forward.3} parent=39 // pred_fallthru
              _
            // Predicated region
            $region45: #{sentiment_forward.3} parent=39 // pred_check
              _
            $region46: #{sentiment_forward.3} parent=39 // pred_check_branch
              %241 = sbr.rel (0) target = $region48
            $region47: #{sentiment_forward.3} parent=39 // pred_region
              %s243 = ssub.s32 16, 1
              loop: start=0, step=1, limit=1
              $region49: #{sentiment_forward.3} parent=47 // loop_pre_header
                _
              $region50: #{sentiment_forward.3} parent=47 // loop_header
                %s245 = sphi 0, %s249
                %p246 = scmp.ge.s32.totalorder %s245, 1
                %s250 = sphi %s235, %s235
                %s251 = sphi %s229, %s229
              $region51: #{sentiment_forward.3} parent=47 // loop_header_branch
                %248 = sbr.rel (%p246) target = $region55
              $region52: #{sentiment_forward.3} parent=47 // loop_body
                %v252 = vld [vmem:[%s250] sm:%s243]
                %253 = vst [vmem:[%s251] sm:%s243] %v252
                %v254 = vld [vmem:[%s250 + $0x8] sm:%s243]
                %255 = vst [vmem:[%s251 + $0x4] sm:%s243] %v254
                %v256 = vld [vmem:[%s250 + $0x10] sm:%s243]
                %257 = vst [vmem:[%s251 + $0x8] sm:%s243] %v256
                %v258 = vld [vmem:[%s250 + $0x18] sm:%s243]
                %259 = vst [vmem:[%s251 + $0xc] sm:%s243] %v258
              $region53: #{sentiment_forward.3} parent=47 // loop_footer
                %s249 = sadd.s32 1, %s245
              $region54: #{sentiment_forward.3} parent=47 // loop_footer_branch
                %244 = sbr.rel target = $region50
              $region55: #{sentiment_forward.3} parent=47 // loop_exit
                _
            $region48: #{sentiment_forward.3} parent=39 // pred_fallthru
              _
          $region40: #{sentiment_forward.3} parent=35 // pred_fallthru
            _
          %288 = vnop
        $region36: #{sentiment_forward.3} parent=31 // pred_fallthru
          _
        // Predicated region
        $region74: #{sentiment_forward.3} parent=31 // pred_check
          %p289 = pneg %p76
        $region75: #{sentiment_forward.3} parent=31 // pred_check_branch
          %291 = sbr.rel (%p289) target = $region77
        $region76: #{sentiment_forward.3} parent=31 // pred_region
          %s292 = sand.u32 %s66, 1
          %s293 = sand.u32 %s66, 1
          %s294 = smul.addr %s293, 16
          %s295 = scalar_lea.vmem [#allocation7], %s294
          %s296 = ssub.s32 1, %s20
          %s297 = smul.u32 4, %s296
          %s298 = smul.addr %s19, 2
          %s299 = sadd.s32 1, %s298
          %s300 = smul.addr %s297, 2
          %s301 = sadd.s32 %s299, %s300
          %s302 = smul.addr %s301, 4
          %s303 = scalar_lea.vmem %s1, %s302
          // Predicated region
          $region78: #{sentiment_forward.3} parent=76 // pred_check
            _
          $region79: #{sentiment_forward.3} parent=76 // pred_check_branch
            %305 = sbr.rel (0) target = $region81
          $region80: #{sentiment_forward.3} parent=76 // pred_region
            // Predicated region
            $region82: #{sentiment_forward.3} parent=80 // pred_check
              _
            $region83: #{sentiment_forward.3} parent=80 // pred_check_branch
              %307 = sbr.rel target = $region85
            $region84: #{sentiment_forward.3} parent=80 // pred_region
              // Predicated region
              $region97: #{sentiment_forward.3} parent=84 // pred_check
                _
              $region98: #{sentiment_forward.3} parent=84 // pred_check_branch
                %329 = sbr.rel (0) target = $region100
              $region99: #{sentiment_forward.3} parent=84 // pred_region
                loop: start=0, step=1, limit=1
                $region101: #{sentiment_forward.3} parent=99 // loop_pre_header
                  _
                $region102: #{sentiment_forward.3} parent=99 // loop_header
                  %s331 = sphi 0, %s335
                  %p332 = scmp.ge.s32.totalorder %s331, 1
                  %s336 = sphi %s303, %s303
                  %s337 = sphi %s295, %s295
                $region103: #{sentiment_forward.3} parent=99 // loop_header_branch
                  %334 = sbr.rel (%p332) target = $region107
                $region104: #{sentiment_forward.3} parent=99 // loop_body
                  _
                $region105: #{sentiment_forward.3} parent=99 // loop_footer
                  %s335 = sadd.s32 1, %s331
                $region106: #{sentiment_forward.3} parent=99 // loop_footer_branch
                  %330 = sbr.rel target = $region102
                $region107: #{sentiment_forward.3} parent=99 // loop_exit
                  _
                %s339 = ssub.s32 16, 1
                loop: start=0, step=1, limit=1
                $region108: #{sentiment_forward.3} parent=99 // loop_pre_header
                  _
                $region109: #{sentiment_forward.3} parent=99 // loop_header
                  %s341 = sphi 0, %s345
                  %p342 = scmp.ge.s32.totalorder %s341, 1
                  %s346 = sphi %s303, %s303
                  %s347 = sphi %s295, %s295
                $region110: #{sentiment_forward.3} parent=99 // loop_header_branch
                  %344 = sbr.rel (%p342) target = $region114
                $region111: #{sentiment_forward.3} parent=99 // loop_body
                  %v348 = vld [vmem:[%s346] sm:%s339]
                  %349 = vst [vmem:[%s347] sm:%s339] %v348
                  %v350 = vld [vmem:[%s346 + $0x8] sm:%s339]
                  %351 = vst [vmem:[%s347 + $0x4] sm:%s339] %v350
                  %v352 = vld [vmem:[%s346 + $0x10] sm:%s339]
                  %353 = vst [vmem:[%s347 + $0x8] sm:%s339] %v352
                  %v354 = vld [vmem:[%s346 + $0x18] sm:%s339]
                  %355 = vst [vmem:[%s347 + $0xc] sm:%s339] %v354
                $region112: #{sentiment_forward.3} parent=99 // loop_footer
                  %s345 = sadd.s32 1, %s341
                $region113: #{sentiment_forward.3} parent=99 // loop_footer_branch
                  %340 = sbr.rel target = $region109
                $region114: #{sentiment_forward.3} parent=99 // loop_exit
                  _
              $region100: #{sentiment_forward.3} parent=84 // pred_fallthru
                _
            $region85: #{sentiment_forward.3} parent=80 // pred_fallthru
              _
            // Predicated region
            $region86: #{sentiment_forward.3} parent=80 // pred_check
              _
            $region87: #{sentiment_forward.3} parent=80 // pred_check_branch
              %309 = sbr.rel (0) target = $region89
            $region88: #{sentiment_forward.3} parent=80 // pred_region
              %s311 = ssub.s32 16, 1
              loop: start=0, step=1, limit=1
              $region90: #{sentiment_forward.3} parent=88 // loop_pre_header
                _
              $region91: #{sentiment_forward.3} parent=88 // loop_header
                %s313 = sphi 0, %s317
                %p314 = scmp.ge.s32.totalorder %s313, 1
                %s318 = sphi %s303, %s303
                %s319 = sphi %s295, %s295
              $region92: #{sentiment_forward.3} parent=88 // loop_header_branch
                %316 = sbr.rel (%p314) target = $region96
              $region93: #{sentiment_forward.3} parent=88 // loop_body
                %v320 = vld [vmem:[%s318] sm:%s311]
                %321 = vst [vmem:[%s319] sm:%s311] %v320
                %v322 = vld [vmem:[%s318 + $0x8] sm:%s311]
                %323 = vst [vmem:[%s319 + $0x4] sm:%s311] %v322
                %v324 = vld [vmem:[%s318 + $0x10] sm:%s311]
                %325 = vst [vmem:[%s319 + $0x8] sm:%s311] %v324
                %v326 = vld [vmem:[%s318 + $0x18] sm:%s311]
                %327 = vst [vmem:[%s319 + $0xc] sm:%s311] %v326
              $region94: #{sentiment_forward.3} parent=88 // loop_footer
                %s317 = sadd.s32 1, %s313
              $region95: #{sentiment_forward.3} parent=88 // loop_footer_branch
                %312 = sbr.rel target = $region91
              $region96: #{sentiment_forward.3} parent=88 // loop_exit
                _
            $region89: #{sentiment_forward.3} parent=80 // pred_fallthru
              _
          $region81: #{sentiment_forward.3} parent=76 // pred_fallthru
            _
          %356 = vnop
        $region77: #{sentiment_forward.3} parent=31 // pred_fallthru
          _
      $region32: #{sentiment_forward.3} parent=5 // pred_fallthru
        _
      %p357 = scmp.le.s32.totalorder 1, %s12
      %p358 = scmp.lt.s32.totalorder %s12, 3
      %p359 = pnand %p357, %p358
      %p360 = pneg %p359
      // Predicated region
      $region115: #{sentiment_forward.3} parent=5 // pred_check
        _
      $region116: #{sentiment_forward.3} parent=5 // pred_check_branch
        %362 = sbr.rel (%p359) target = $region118
      $region117: #{sentiment_forward.3} parent=5 // pred_region
        %s363 = ssub.s32 %s12, 1
        %s364 = sand.u32 %s39, 1
        %s365 = sand.u32 %s39, 1
        %s366 = smul.addr %s365, 16
        %s367 = scalar_lea.vmem [#allocation6], %s366
        // Predicated region
        $region119: #{sentiment_forward.3} parent=117 // pred_check
          %p368 = pneg %p52
        $region120: #{sentiment_forward.3} parent=117 // pred_check_branch
          %370 = sbr.rel (%p368) target = $region122
        $region121: #{sentiment_forward.3} parent=117 // pred_region
          _
        $region122: #{sentiment_forward.3} parent=117 // pred_fallthru
          _
        %s371 = sand.u32 %s69, 1
        %s372 = sand.u32 %s69, 1
        %s373 = smul.addr %s372, 16
        %s374 = scalar_lea.vmem [#allocation7], %s373
        // Predicated region
        $region123: #{sentiment_forward.3} parent=117 // pred_check
          %p375 = pneg %p82
        $region124: #{sentiment_forward.3} parent=117 // pred_check_branch
          %377 = sbr.rel (%p375) target = $region126
        $region125: #{sentiment_forward.3} parent=117 // pred_region
          _
        $region126: #{sentiment_forward.3} parent=117 // pred_fallthru
          _
        %s378 = sand.u32 %s39, 1
        %s379 = sand.u32 %s39, 1
        %s380 = smul.addr %s379, 16
        %s381 = scalar_lea.vmem [#allocation6], %s380
        %p382 = pneg %p52
        %p383 = pneg %p49
        %s384 = sand.u32 %s69, 1
        %s385 = sand.u32 %s69, 1
        %s386 = smul.addr %s385, 16
        %s387 = scalar_lea.vmem [#allocation7], %s386
        %p388 = pneg %p82
        %p389 = pneg %p79
        %p390 = pneg %p103
        %p391 = pneg %p100
        %p392 = pneg %p124
        %p393 = pneg %p121
        %p394 = pneg %p145
        %p395 = pneg %p142
        %p396 = pneg %p166
        %p397 = pneg %p163
        %p398 = pneg %p192
        %p399 = pneg %p189
        %p400 = scmp.lt.s32.totalorder %s21, 0
        %s401 = scalar_select %p400, %s21, 0
        %s402 = smul.addr %s401, 8
        %s403 = scalar_lea.vmem %s6, %s402
        %s404 = smul.u32 4, %s22
        %s405 = ssub.s32 1, %s22
        %s406 = smul.u32 4, %s405
        %p407 = scmp.lt.s32.totalorder %s21, 0
        %s408 = scalar_select %p407, %s21, 0
        %s409 = smul.addr %s408, 8
        %s410 = scalar_lea.vmem %s6, %s409
        %p412 = scmp.eq.s32.totalorder %s22, 0
        // Predicated region
        $region127: #{sentiment_forward.3} parent=117 // pred_check
          %p413 = pneg %p412
        $region128: #{sentiment_forward.3} parent=117 // pred_check_branch
          %415 = sbr.rel (%p413) target = $region130
        $region129: #{sentiment_forward.3} parent=117 // pred_region
          %vm416 = vcmask 261120
          %417 = vst.msk [vmem:[#allocation2] sm:$0xff] %vm416, 0.0
          %418 = vst.msk [vmem:[#allocation3] sm:$0xff] %vm416, 0.0
          %419 = vst.msk [vmem:[#allocation4] sm:$0xff] %vm416, 0.0
          %420 = vst.msk [vmem:[#allocation5] sm:$0xff] %vm416, 0.0
        $region130: #{sentiment_forward.3} parent=117 // pred_fallthru
          _
        %v421 = vld [vmem:[%s2] sm:$0xf]
        %v422 = vld [vmem:[%s2 + $0x4] sm:$0xf]
        %v423 = vld [vmem:[%s2 + $0x8] sm:$0xf]
        %v424 = vld [vmem:[%s2 + $0xc] sm:$0xf]
        %v425 = vld [vmem:[%s3] sm:$0xf]
        %v426 = vld [vmem:[%s3 + $0x4] sm:$0xf]
        %v427 = vld [vmem:[%s3 + $0x8] sm:$0xf]
        %v428 = vld [vmem:[%s3 + $0xc] sm:$0xf]
        %v429 = vld [vmem:[#allocation2] sm:$0xff]
        %v430 = vld [vmem:[#allocation3] sm:$0xff]
        %v431 = vld [vmem:[#allocation4] sm:$0xff]
        %v432 = vld [vmem:[#allocation5] sm:$0xff]
        %v433 = vld [vmem:[%s367] sm:$0xf]
        %v434 = vunpack.c.l.bf16 %v433
        %v435 = vpack.c.bf16 %v429, %v429
        %v440 = vunpack.c.l.b16 %v421
        %v441 = vunpack.c.l.b16 %v422
        %v442 = vunpack.c.l.b16 %v423
        %v443 = vunpack.c.l.b16 %v424
        %v444 = vpack.c.b16 %v441, %v440
        %v445 = vpack.c.b16 %v443, %v442
        %vm448 = vcmask 261120
        %v450 = vsel %vm448, %v435, 0
        %452 = vmatprep.subr.bf16.mxu0 0
        %453 = vmatpush1.bf16.msra.mxu0 0
        %454 = vmatprep.subr.bf16.mxu0 0
        %455 = vmatpush1.bf16.msra.mxu0 0
        %456 = vmatprep.subr.bf16.mxu0 0
        %457 = vmatpush1.bf16.msra.mxu0 0
        %458 = vmatprep.subr.bf16.mxu0 0
        %459 = vmatpush1.bf16.msra.mxu0 0
        %460 = vmatprep.subr.bf16.mxu0 0
        %461 = vmatpush1.bf16.msra.mxu0 0
        %462 = vmatprep.subr.bf16.mxu0 0
        %463 = vmatpush1.bf16.msra.mxu0 0
        %464 = vmatprep.subr.bf16.mxu0 0
        %465 = vmatpush1.bf16.msra.mxu0 %v445
        %466 = vmatprep.subr.bf16.mxu0 0
        %467 = vmatpush1.bf16.msra.mxu0 %v444
        %468 = vmatprep.subr.bf16.mxu0 0
        %469 = vmatpush2.bf16.msra.mxu0 0
        %470 = vmatprep.subr.bf16.mxu0 0
        %471 = vmatpush2.bf16.msra.mxu0 0
        %472 = vmatprep.subr.bf16.mxu0 0
        %473 = vmatpush2.bf16.msra.mxu0 0
        %474 = vmatprep.subr.bf16.mxu0 0
        %475 = vmatpush2.bf16.msra.mxu0 0
        %476 = vmatprep.subr.bf16.mxu0 0
        %477 = vmatpush2.bf16.msra.mxu0 0
        %478 = vmatprep.subr.bf16.mxu0 0
        %479 = vmatpush2.bf16.msra.mxu0 0
        %480 = vmatprep.subr.bf16.mxu0 0
        %481 = vmatpush2.bf16.msra.mxu0 0
        %482 = vmatprep.subr.bf16.mxu0 0
        %483 = vmatpush2.bf16.msra.mxu0 0
        %484 = vmatprep.mubr.bf16.mxu0 0
        %485 = vmatmul.mubr.bf16.gmra.mxu0 %v450
        %v486 = vpop.f32.mrf.mxu0
        %v487 = vadd.f32 0.0, %v486
        %v488 = vpop.f32.mrf.mxu0
        %v489 = vpop.f32.mrf.mxu0
        %v490 = vpop.f32.mrf.mxu0
        %491 = vdwg.mxu0
        %v492 = vadd.f32 %v434, %v487
        %s493 = scalar_lea.vmem %s374, 12 [#allocation7]
        %v494 = vld [vmem:[%s493] sm:$0xf]
        %v495 = vunpack.c.l.bf16 %v494
        %v496 = vpack.c.bf16 %v431, %v431
        %v501 = vunpack.c.l.b16 %v425
        %v502 = vunpack.c.l.b16 %v426
        %v503 = vunpack.c.l.b16 %v427
        %v504 = vunpack.c.l.b16 %v428
        %v505 = vpack.c.b16 %v502, %v501
        %v506 = vpack.c.b16 %v504, %v503
        %v510 = vsel %vm448, %v496, 0
        %512 = vmatprep.subr.bf16.mxu0 0
        %513 = vmatpush1.bf16.msra.mxu0 0
        %514 = vmatprep.subr.bf16.mxu0 0
        %515 = vmatpush1.bf16.msra.mxu0 0
        %516 = vmatprep.subr.bf16.mxu0 0
        %517 = vmatpush1.bf16.msra.mxu0 0
        %518 = vmatprep.subr.bf16.mxu0 0
        %519 = vmatpush1.bf16.msra.mxu0 0
        %520 = vmatprep.subr.bf16.mxu0 0
        %521 = vmatpush1.bf16.msra.mxu0 0
        %522 = vmatprep.subr.bf16.mxu0 0
        %523 = vmatpush1.bf16.msra.mxu0 0
        %524 = vmatprep.subr.bf16.mxu0 0
        %525 = vmatpush1.bf16.msra.mxu0 %v506
        %526 = vmatprep.subr.bf16.mxu0 0
        %527 = vmatpush1.bf16.msra.mxu0 %v505
        %528 = vmatprep.subr.bf16.mxu0 0
        %529 = vmatpush2.bf16.msra.mxu0 0
        %530 = vmatprep.subr.bf16.mxu0 0
        %531 = vmatpush2.bf16.msra.mxu0 0
        %532 = vmatprep.subr.bf16.mxu0 0
        %533 = vmatpush2.bf16.msra.mxu0 0
        %534 = vmatprep.subr.bf16.mxu0 0
        %535 = vmatpush2.bf16.msra.mxu0 0
        %536 = vmatprep.subr.bf16.mxu0 0
        %537 = vmatpush2.bf16.msra.mxu0 0
        %538 = vmatprep.subr.bf16.mxu0 0
        %539 = vmatpush2.bf16.msra.mxu0 0
        %540 = vmatprep.subr.bf16.mxu0 0
        %541 = vmatpush2.bf16.msra.mxu0 0
        %542 = vmatprep.subr.bf16.mxu0 0
        %543 = vmatpush2.bf16.msra.mxu0 0
        %544 = vmatprep.mubr.bf16.mxu0 0
        %545 = vmatmul.mubr.bf16.gmra.mxu0 %v510
        %v546 = vpop.f32.mrf.mxu0
        %v547 = vadd.f32 0.0, %v546
        %v548 = vpop.f32.mrf.mxu0
        %v549 = vpop.f32.mrf.mxu0
        %v550 = vpop.f32.mrf.mxu0
        %551 = vdwg.mxu0
        %v552 = vadd.f32 %v495, %v547
        %v553 = vxor.u32 %v492, 2147483648
        %v554 = vmul.f32 %v553, 1.442695
        %v555 = vpow.pop %v554
        %v556 = vadd.f32 %v555, 1.0
        %v557 = vrcp.pop %v556
        %v558 = vmul.f32 1.0, %v557
        %v559 = vtanh.pop %v492
        %561 = vrot.lane.b32.xlu0 %v430, 32
        %v562 = vpop.permute.xlu0 %561
        %v564 = vmul.f32 %v558, %v562
        %566 = vrot.lane.b32.xlu0 %v559, 32
        %v567 = vpop.permute.xlu0 %566
        %v569 = vmul.f32 %v558, %v567
        %571 = vrot.lane.b32.xlu0 %v569, 32
        %v572 = vpop.permute.xlu0 %571
        %v574 = vadd.f32 %v564, %v572
        %v575 = vtanh.pop %v574
        %577 = vrot.lane.b32.xlu0 %v575, 32
        %v578 = vpop.permute.xlu0 %577
        %v580 = vmul.f32 %v558, %v578
        %v581 = vxor.u32 %v552, 2147483648
        %v582 = vmul.f32 %v581, 1.442695
        %v583 = vpow.pop %v582
        %v584 = vadd.f32 %v583, 1.0
        %v585 = vrcp.pop %v584
        %v586 = vmul.f32 1.0, %v585
        %v587 = vtanh.pop %v552
        %589 = vrot.lane.b32.xlu0 %v432, 32
        %v590 = vpop.permute.xlu0 %589
        %v592 = vmul.f32 %v586, %v590
        %594 = vrot.lane.b32.xlu0 %v587, 32
        %v595 = vpop.permute.xlu0 %594
        %v597 = vmul.f32 %v586, %v595
        %599 = vrot.lane.b32.xlu0 %v597, 32
        %v600 = vpop.permute.xlu0 %599
        %v602 = vadd.f32 %v592, %v600
        %v603 = vtanh.pop %v602
        %605 = vrot.lane.b32.xlu0 %v603, 32
        %v606 = vpop.permute.xlu0 %605
        %v608 = vmul.f32 %v586, %v606
        %s609 = scalar_lea.vmem %s367, 4 [#allocation6]
        %v610 = vld [vmem:[%s609] sm:$0xf]
        %v611 = vunpack.c.l.bf16 %v610
        %v612 = vpack.c.bf16 %v580, %v580
        %614 = vrot.lane.b32.xlu0 %v612, 64
        %v615 = vpop.permute.xlu0 %614
        %v617 = vsel %vm448, %v615, 0
        %619 = vmatprep.subr.bf16.mxu0 0
        %620 = vmatpush1.bf16.msra.mxu0 0
        %621 = vmatprep.subr.bf16.mxu0 0
        %622 = vmatpush1.bf16.msra.mxu0 0
        %623 = vmatprep.subr.bf16.mxu0 0
        %624 = vmatpush1.bf16.msra.mxu0 0
        %625 = vmatprep.subr.bf16.mxu0 0
        %626 = vmatpush1.bf16.msra.mxu0 0
        %627 = vmatprep.subr.bf16.mxu0 0
        %628 = vmatpush1.bf16.msra.mxu0 0
        %629 = vmatprep.subr.bf16.mxu0 0
        %630 = vmatpush1.bf16.msra.mxu0 0
        %631 = vmatprep.subr.bf16.mxu0 0
        %632 = vmatpush1.bf16.msra.mxu0 %v445
        %633 = vmatprep.subr.bf16.mxu0 0
        %634 = vmatpush1.bf16.msra.mxu0 %v444
        %635 = vmatprep.subr.bf16.mxu0 0
        %636 = vmatpush2.bf16.msra.mxu0 0
        %637 = vmatprep.subr.bf16.mxu0 0
        %638 = vmatpush2.bf16.msra.mxu0 0
        %639 = vmatprep.subr.bf16.mxu0 0
        %640 = vmatpush2.bf16.msra.mxu0 0
        %641 = vmatprep.subr.bf16.mxu0 0
        %642 = vmatpush2.bf16.msra.mxu0 0
        %643 = vmatprep.subr.bf16.mxu0 0
        %644 = vmatpush2.bf16.msra.mxu0 0
        %645 = vmatprep.subr.bf16.mxu0 0
        %646 = vmatpush2.bf16.msra.mxu0 0
        %647 = vmatprep.subr.bf16.mxu0 0
        %648 = vmatpush2.bf16.msra.mxu0 0
        %649 = vmatprep.subr.bf16.mxu0 0
        %650 = vmatpush2.bf16.msra.mxu0 0
        %651 = vmatprep.mubr.bf16.mxu0 0
        %652 = vmatmul.mubr.bf16.gmra.mxu0 %v617
        %v653 = vpop.f32.mrf.mxu0
        %v654 = vadd.f32 0.0, %v653
        %v655 = vpop.f32.mrf.mxu0
        %v656 = vpop.f32.mrf.mxu0
        %v657 = vpop.f32.mrf.mxu0
        %658 = vdwg.mxu0
        %v659 = vadd.f32 %v611, %v654
        %s660 = scalar_lea.vmem %s374, 8 [#allocation7]
        %v661 = vld [vmem:[%s660] sm:$0xf]
        %v662 = vunpack.c.l.bf16 %v661
        %v663 = vpack.c.bf16 %v608, %v608
        %665 = vrot.lane.b32.xlu0 %v663, 64
        %v666 = vpop.permute.xlu0 %665
        %v668 = vsel %vm448, %v666, 0
        %670 = vmatprep.subr.bf16.mxu0 0
        %671 = vmatpush1.bf16.msra.mxu0 0
        %672 = vmatprep.subr.bf16.mxu0 0
        %673 = vmatpush1.bf16.msra.mxu0 0
        %674 = vmatprep.subr.bf16.mxu0 0
        %675 = vmatpush1.bf16.msra.mxu0 0
        %676 = vmatprep.subr.bf16.mxu0 0
        %677 = vmatpush1.bf16.msra.mxu0 0
        %678 = vmatprep.subr.bf16.mxu0 0
        %679 = vmatpush1.bf16.msra.mxu0 0
        %680 = vmatprep.subr.bf16.mxu0 0
        %681 = vmatpush1.bf16.msra.mxu0 0
        %682 = vmatprep.subr.bf16.mxu0 0
        %683 = vmatpush1.bf16.msra.mxu0 %v506
        %684 = vmatprep.subr.bf16.mxu0 0
        %685 = vmatpush1.bf16.msra.mxu0 %v505
        %686 = vmatprep.subr.bf16.mxu0 0
        %687 = vmatpush2.bf16.msra.mxu0 0
        %688 = vmatprep.subr.bf16.mxu0 0
        %689 = vmatpush2.bf16.msra.mxu0 0
        %690 = vmatprep.subr.bf16.mxu0 0
        %691 = vmatpush2.bf16.msra.mxu0 0
        %692 = vmatprep.subr.bf16.mxu0 0
        %693 = vmatpush2.bf16.msra.mxu0 0
        %694 = vmatprep.subr.bf16.mxu0 0
        %695 = vmatpush2.bf16.msra.mxu0 0
        %696 = vmatprep.subr.bf16.mxu0 0
        %697 = vmatpush2.bf16.msra.mxu0 0
        %698 = vmatprep.subr.bf16.mxu0 0
        %699 = vmatpush2.bf16.msra.mxu0 0
        %700 = vmatprep.subr.bf16.mxu0 0
        %701 = vmatpush2.bf16.msra.mxu0 0
        %702 = vmatprep.mubr.bf16.mxu0 0
        %703 = vmatmul.mubr.bf16.gmra.mxu0 %v668
        %v704 = vpop.f32.mrf.mxu0
        %v705 = vadd.f32 0.0, %v704
        %v706 = vpop.f32.mrf.mxu0
        %v707 = vpop.f32.mrf.mxu0
        %v708 = vpop.f32.mrf.mxu0
        %709 = vdwg.mxu0
        %v710 = vadd.f32 %v662, %v705
        %v711 = vxor.u32 %v659, 2147483648
        %v712 = vmul.f32 %v711, 1.442695
        %v713 = vpow.pop %v712
        %v714 = vadd.f32 %v713, 1.0
        %v715 = vrcp.pop %v714
        %v716 = vmul.f32 1.0, %v715
        %v717 = vtanh.pop %v659
        %v718 = vmul.f32 %v716, %v574
        %720 = vrot.lane.b32.xlu0 %v717, 32
        %v721 = vpop.permute.xlu0 %720
        %v723 = vmul.f32 %v716, %v721
        %725 = vrot.lane.b32.xlu0 %v723, 32
        %v726 = vpop.permute.xlu0 %725
        %v728 = vadd.f32 %v718, %v726
        %v729 = vtanh.pop %v728
        %731 = vrot.lane.b32.xlu0 %v729, 32
        %v732 = vpop.permute.xlu0 %731
        %v734 = vmul.f32 %v716, %v732
        %v735 = vxor.u32 %v710, 2147483648
        %v736 = vmul.f32 %v735, 1.442695
        %v737 = vpow.pop %v736
        %v738 = vadd.f32 %v737, 1.0
        %v739 = vrcp.pop %v738
        %v740 = vmul.f32 1.0, %v739
        %v741 = vtanh.pop %v710
        %v742 = vmul.f32 %v740, %v602
        %744 = vrot.lane.b32.xlu0 %v741, 32
        %v745 = vpop.permute.xlu0 %744
        %v747 = vmul.f32 %v740, %v745
        %749 = vrot.lane.b32.xlu0 %v747, 32
        %v750 = vpop.permute.xlu0 %749
        %v752 = vadd.f32 %v742, %v750
        %v753 = vtanh.pop %v752
        %755 = vrot.lane.b32.xlu0 %v753, 32
        %v756 = vpop.permute.xlu0 %755
        %v758 = vmul.f32 %v740, %v756
        %s759 = scalar_lea.vmem %s367, 8 [#allocation6]
        %v760 = vld [vmem:[%s759] sm:$0xf]
        %v761 = vunpack.c.l.bf16 %v760
        %v762 = vpack.c.bf16 %v734, %v734
        %764 = vrot.lane.b32.xlu0 %v762, 64
        %v765 = vpop.permute.xlu0 %764
        %v767 = vsel %vm448, %v765, 0
        %769 = vmatprep.subr.bf16.mxu0 0
        %770 = vmatpush1.bf16.msra.mxu0 0
        %771 = vmatprep.subr.bf16.mxu0 0
        %772 = vmatpush1.bf16.msra.mxu0 0
        %773 = vmatprep.subr.bf16.mxu0 0
        %774 = vmatpush1.bf16.msra.mxu0 0
        %775 = vmatprep.subr.bf16.mxu0 0
        %776 = vmatpush1.bf16.msra.mxu0 0
        %777 = vmatprep.subr.bf16.mxu0 0
        %778 = vmatpush1.bf16.msra.mxu0 0
        %779 = vmatprep.subr.bf16.mxu0 0
        %780 = vmatpush1.bf16.msra.mxu0 0
        %781 = vmatprep.subr.bf16.mxu0 0
        %782 = vmatpush1.bf16.msra.mxu0 %v445
        %783 = vmatprep.subr.bf16.mxu0 0
        %784 = vmatpush1.bf16.msra.mxu0 %v444
        %785 = vmatprep.subr.bf16.mxu0 0
        %786 = vmatpush2.bf16.msra.mxu0 0
        %787 = vmatprep.subr.bf16.mxu0 0
        %788 = vmatpush2.bf16.msra.mxu0 0
        %789 = vmatprep.subr.bf16.mxu0 0
        %790 = vmatpush2.bf16.msra.mxu0 0
        %791 = vmatprep.subr.bf16.mxu0 0
        %792 = vmatpush2.bf16.msra.mxu0 0
        %793 = vmatprep.subr.bf16.mxu0 0
        %794 = vmatpush2.bf16.msra.mxu0 0
        %795 = vmatprep.subr.bf16.mxu0 0
        %796 = vmatpush2.bf16.msra.mxu0 0
        %797 = vmatprep.subr.bf16.mxu0 0
        %798 = vmatpush2.bf16.msra.mxu0 0
        %799 = vmatprep.subr.bf16.mxu0 0
        %800 = vmatpush2.bf16.msra.mxu0 0
        %801 = vmatprep.mubr.bf16.mxu0 0
        %802 = vmatmul.mubr.bf16.gmra.mxu0 %v767
        %v803 = vpop.f32.mrf.mxu0
        %v804 = vadd.f32 0.0, %v803
        %v805 = vpop.f32.mrf.mxu0
        %v806 = vpop.f32.mrf.mxu0
        %v807 = vpop.f32.mrf.mxu0
        %808 = vdwg.mxu0
        %v809 = vadd.f32 %v761, %v804
        %s810 = scalar_lea.vmem %s374, 4 [#allocation7]
        %v811 = vld [vmem:[%s810] sm:$0xf]
        %v812 = vunpack.c.l.bf16 %v811
        %v813 = vpack.c.bf16 %v758, %v758
        %815 = vrot.lane.b32.xlu0 %v813, 64
        %v816 = vpop.permute.xlu0 %815
        %v818 = vsel %vm448, %v816, 0
        %820 = vmatprep.subr.bf16.mxu0 0
        %821 = vmatpush1.bf16.msra.mxu0 0
        %822 = vmatprep.subr.bf16.mxu0 0
        %823 = vmatpush1.bf16.msra.mxu0 0
        %824 = vmatprep.subr.bf16.mxu0 0
        %825 = vmatpush1.bf16.msra.mxu0 0
        %826 = vmatprep.subr.bf16.mxu0 0
        %827 = vmatpush1.bf16.msra.mxu0 0
        %828 = vmatprep.subr.bf16.mxu0 0
        %829 = vmatpush1.bf16.msra.mxu0 0
        %830 = vmatprep.subr.bf16.mxu0 0
        %831 = vmatpush1.bf16.msra.mxu0 0
        %832 = vmatprep.subr.bf16.mxu0 0
        %833 = vmatpush1.bf16.msra.mxu0 %v506
        %834 = vmatprep.subr.bf16.mxu0 0
        %835 = vmatpush1.bf16.msra.mxu0 %v505
        %836 = vmatprep.subr.bf16.mxu0 0
        %837 = vmatpush2.bf16.msra.mxu0 0
        %838 = vmatprep.subr.bf16.mxu0 0
        %839 = vmatpush2.bf16.msra.mxu0 0
        %840 = vmatprep.subr.bf16.mxu0 0
        %841 = vmatpush2.bf16.msra.mxu0 0
        %842 = vmatprep.subr.bf16.mxu0 0
        %843 = vmatpush2.bf16.msra.mxu0 0
        %844 = vmatprep.subr.bf16.mxu0 0
        %845 = vmatpush2.bf16.msra.mxu0 0
        %846 = vmatprep.subr.bf16.mxu0 0
        %847 = vmatpush2.bf16.msra.mxu0 0
        %848 = vmatprep.subr.bf16.mxu0 0
        %849 = vmatpush2.bf16.msra.mxu0 0
        %850 = vmatprep.subr.bf16.mxu0 0
        %851 = vmatpush2.bf16.msra.mxu0 0
        %852 = vmatprep.mubr.bf16.mxu0 0
        %853 = vmatmul.mubr.bf16.gmra.mxu0 %v818
        %v854 = vpop.f32.mrf.mxu0
        %v855 = vadd.f32 0.0, %v854
        %v856 = vpop.f32.mrf.mxu0
        %v857 = vpop.f32.mrf.mxu0
        %v858 = vpop.f32.mrf.mxu0
        %859 = vdwg.mxu0
        %v860 = vadd.f32 %v812, %v855
        %v861 = vxor.u32 %v809, 2147483648
        %v862 = vmul.f32 %v861, 1.442695
        %v863 = vpow.pop %v862
        %v864 = vadd.f32 %v863, 1.0
        %v865 = vrcp.pop %v864
        %v866 = vmul.f32 1.0, %v865
        %v867 = vtanh.pop %v809
        %v868 = vmul.f32 %v866, %v728
        %870 = vrot.lane.b32.xlu0 %v867, 32
        %v871 = vpop.permute.xlu0 %870
        %v873 = vmul.f32 %v866, %v871
        %875 = vrot.lane.b32.xlu0 %v873, 32
        %v876 = vpop.permute.xlu0 %875
        %v878 = vadd.f32 %v868, %v876
        %v879 = vtanh.pop %v878
        %881 = vrot.lane.b32.xlu0 %v879, 32
        %v882 = vpop.permute.xlu0 %881
        %v884 = vmul.f32 %v866, %v882
        %v885 = vxor.u32 %v860, 2147483648
        %v886 = vmul.f32 %v885, 1.442695
        %v887 = vpow.pop %v886
        %v888 = vadd.f32 %v887, 1.0
        %v889 = vrcp.pop %v888
        %v890 = vmul.f32 1.0, %v889
        %v891 = vtanh.pop %v860
        %v892 = vmul.f32 %v890, %v752
        %894 = vrot.lane.b32.xlu0 %v891, 32
        %v895 = vpop.permute.xlu0 %894
        %v897 = vmul.f32 %v890, %v895
        %899 = vrot.lane.b32.xlu0 %v897, 32
        %v900 = vpop.permute.xlu0 %899
        %v902 = vadd.f32 %v892, %v900
        %v903 = vtanh.pop %v902
        %905 = vrot.lane.b32.xlu0 %v903, 32
        %v906 = vpop.permute.xlu0 %905
        %v908 = vmul.f32 %v890, %v906
        %s909 = scalar_lea.vmem %s367, 12 [#allocation6]
        %v910 = vld [vmem:[%s909] sm:$0xf]
        %v911 = vunpack.c.l.bf16 %v910
        %v912 = vpack.c.bf16 %v884, %v884
        %914 = vrot.lane.b32.xlu0 %v912, 64
        %v915 = vpop.permute.xlu0 %914
        %v917 = vsel %vm448, %v915, 0
        %919 = vmatprep.subr.bf16.mxu0 0
        %920 = vmatpush1.bf16.msra.mxu0 0
        %921 = vmatprep.subr.bf16.mxu0 0
        %922 = vmatpush1.bf16.msra.mxu0 0
        %923 = vmatprep.subr.bf16.mxu0 0
        %924 = vmatpush1.bf16.msra.mxu0 0
        %925 = vmatprep.subr.bf16.mxu0 0
        %926 = vmatpush1.bf16.msra.mxu0 0
        %927 = vmatprep.subr.bf16.mxu0 0
        %928 = vmatpush1.bf16.msra.mxu0 0
        %929 = vmatprep.subr.bf16.mxu0 0
        %930 = vmatpush1.bf16.msra.mxu0 0
        %931 = vmatprep.subr.bf16.mxu0 0
        %932 = vmatpush1.bf16.msra.mxu0 %v445
        %933 = vmatprep.subr.bf16.mxu0 0
        %934 = vmatpush1.bf16.msra.mxu0 %v444
        %935 = vmatprep.subr.bf16.mxu0 0
        %936 = vmatpush2.bf16.msra.mxu0 0
        %937 = vmatprep.subr.bf16.mxu0 0
        %938 = vmatpush2.bf16.msra.mxu0 0
        %939 = vmatprep.subr.bf16.mxu0 0
        %940 = vmatpush2.bf16.msra.mxu0 0
        %941 = vmatprep.subr.bf16.mxu0 0
        %942 = vmatpush2.bf16.msra.mxu0 0
        %943 = vmatprep.subr.bf16.mxu0 0
        %944 = vmatpush2.bf16.msra.mxu0 0
        %945 = vmatprep.subr.bf16.mxu0 0
        %946 = vmatpush2.bf16.msra.mxu0 0
        %947 = vmatprep.subr.bf16.mxu0 0
        %948 = vmatpush2.bf16.msra.mxu0 0
        %949 = vmatprep.subr.bf16.mxu0 0
        %950 = vmatpush2.bf16.msra.mxu0 0
        %951 = vmatprep.mubr.bf16.mxu0 0
        %952 = vmatmul.mubr.bf16.gmra.mxu0 %v917
        %v953 = vpop.f32.mrf.mxu0
        %v954 = vadd.f32 0.0, %v953
        %v955 = vpop.f32.mrf.mxu0
        %v956 = vpop.f32.mrf.mxu0
        %v957 = vpop.f32.mrf.mxu0
        %958 = vdwg.mxu0
        %v959 = vadd.f32 %v911, %v954
        %v960 = vld [vmem:[%s374] sm:$0xf]
        %v961 = vunpack.c.l.bf16 %v960
        %v962 = vpack.c.bf16 %v908, %v908
        %964 = vrot.lane.b32.xlu0 %v962, 64
        %v965 = vpop.permute.xlu0 %964
        %v967 = vsel %vm448, %v965, 0
        %969 = vmatprep.subr.bf16.mxu0 0
        %970 = vmatpush1.bf16.msra.mxu0 0
        %971 = vmatprep.subr.bf16.mxu0 0
        %972 = vmatpush1.bf16.msra.mxu0 0
        %973 = vmatprep.subr.bf16.mxu0 0
        %974 = vmatpush1.bf16.msra.mxu0 0
        %975 = vmatprep.subr.bf16.mxu0 0
        %976 = vmatpush1.bf16.msra.mxu0 0
        %977 = vmatprep.subr.bf16.mxu0 0
        %978 = vmatpush1.bf16.msra.mxu0 0
        %979 = vmatprep.subr.bf16.mxu0 0
        %980 = vmatpush1.bf16.msra.mxu0 0
        %981 = vmatprep.subr.bf16.mxu0 0
        %982 = vmatpush1.bf16.msra.mxu0 %v506
        %983 = vmatprep.subr.bf16.mxu0 0
        %984 = vmatpush1.bf16.msra.mxu0 %v505
        %985 = vmatprep.subr.bf16.mxu0 0
        %986 = vmatpush2.bf16.msra.mxu0 0
        %987 = vmatprep.subr.bf16.mxu0 0
        %988 = vmatpush2.bf16.msra.mxu0 0
        %989 = vmatprep.subr.bf16.mxu0 0
        %990 = vmatpush2.bf16.msra.mxu0 0
        %991 = vmatprep.subr.bf16.mxu0 0
        %992 = vmatpush2.bf16.msra.mxu0 0
        %993 = vmatprep.subr.bf16.mxu0 0
        %994 = vmatpush2.bf16.msra.mxu0 0
        %995 = vmatprep.subr.bf16.mxu0 0
        %996 = vmatpush2.bf16.msra.mxu0 0
        %997 = vmatprep.subr.bf16.mxu0 0
        %998 = vmatpush2.bf16.msra.mxu0 0
        %999 = vmatprep.subr.bf16.mxu0 0
        %1000 = vmatpush2.bf16.msra.mxu0 0
        %1001 = vmatprep.mubr.bf16.mxu0 0
        %1002 = vmatmul.mubr.bf16.gmra.mxu0 %v967
        %v1003 = vpop.f32.mrf.mxu0
        %v1004 = vadd.f32 0.0, %v1003
        %v1005 = vpop.f32.mrf.mxu0
        %v1006 = vpop.f32.mrf.mxu0
        %v1007 = vpop.f32.mrf.mxu0
        %1008 = vdwg.mxu0
        %v1009 = vadd.f32 %v961, %v1004
        %v1010 = vxor.u32 %v959, 2147483648
        %v1011 = vmul.f32 %v1010, 1.442695
        %v1012 = vpow.pop %v1011
        %v1013 = vadd.f32 %v1012, 1.0
        %v1014 = vrcp.pop %v1013
        %v1015 = vmul.f32 1.0, %v1014
        %v1016 = vtanh.pop %v959
        %v1017 = vmul.f32 %v1015, %v878
        %1019 = vrot.lane.b32.xlu0 %v1016, 32
        %v1020 = vpop.permute.xlu0 %1019
        %v1022 = vmul.f32 %v1015, %v1020
        %1024 = vrot.lane.b32.xlu0 %v1022, 32
        %v1025 = vpop.permute.xlu0 %1024
        %v1027 = vadd.f32 %v1017, %v1025
        %v1028 = vtanh.pop %v1027
        %1030 = vrot.lane.b32.xlu0 %v1028, 32
        %v1031 = vpop.permute.xlu0 %1030
        %v1033 = vmul.f32 %v1015, %v1031
        %v1034 = vxor.u32 %v1009, 2147483648
        %v1035 = vmul.f32 %v1034, 1.442695
        %v1036 = vpow.pop %v1035
        %v1037 = vadd.f32 %v1036, 1.0
        %v1038 = vrcp.pop %v1037
        %v1039 = vmul.f32 1.0, %v1038
        %v1040 = vtanh.pop %v1009
        %v1041 = vmul.f32 %v1039, %v902
        %1043 = vrot.lane.b32.xlu0 %v1040, 32
        %v1044 = vpop.permute.xlu0 %1043
        %v1046 = vmul.f32 %v1039, %v1044
        %1048 = vrot.lane.b32.xlu0 %v1046, 32
        %v1049 = vpop.permute.xlu0 %1048
        %v1051 = vadd.f32 %v1041, %v1049
        %v1052 = vtanh.pop %v1051
        %1054 = vrot.lane.b32.xlu0 %v1052, 32
        %v1055 = vpop.permute.xlu0 %1054
        %v1057 = vmul.f32 %v1039, %v1055
        %1059 = vrot.lane.b32.xlu0 %v1033, 64
        %v1060 = vpop.permute.xlu0 %1059
        %1062 = vst.msk [vmem:[#allocation2] sm:$0xff] %vm448, %v1060
        %1064 = vrot.lane.b32.xlu0 %v1027, 96
        %v1065 = vpop.permute.xlu0 %1064
        %1067 = vst.msk [vmem:[#allocation3] sm:$0xff] %vm448, %v1065
        %1069 = vrot.lane.b32.xlu0 %v1057, 64
        %v1070 = vpop.permute.xlu0 %1069
        %1072 = vst.msk [vmem:[#allocation4] sm:$0xff] %vm448, %v1070
        %1074 = vrot.lane.b32.xlu0 %v1051, 96
        %v1075 = vpop.permute.xlu0 %1074
        %1077 = vst.msk [vmem:[#allocation5] sm:$0xff] %vm448, %v1075
        %p1078 = scmp.eq.s32.totalorder %s22, 1
        // Predicated region
        $region131: #{sentiment_forward.3} parent=117 // pred_check
          %p1079 = pneg %p1078
        $region132: #{sentiment_forward.3} parent=117 // pred_check_branch
          %1081 = sbr.rel (%p1079) target = $region134
        $region133: #{sentiment_forward.3} parent=117 // pred_region
          %1082 = vrot.lane.b32.xlu0 %v1057, 96
          %v1083 = vpop.permute.xlu0 %1082
          %v1085 = vsel %vm448, %v1060, %v1083
          %v1086 = vld [vmem:[%s4] sm:$0xff]
          %v1087 = vld [vmem:[%s4 + $0x8] sm:$0xff]
          %v1088 = vld [vmem:[%s4 + $0x10] sm:$0xff]
          %v1089 = vld [vmem:[%s4 + $0x18] sm:$0xff]
          %v1090 = vld [vmem:[%s4 + $0x20] sm:$0xff]
          %v1091 = vld [vmem:[%s4 + $0x28] sm:$0xff]
          %v1092 = vld [vmem:[%s4 + $0x30] sm:$0xff]
          %v1093 = vld [vmem:[%s4 + $0x38] sm:$0xff]
          %v1094 = vld [vmem:[%s5] sm:$0x1]
          %v1096 = vlaneseq
          %v1097 = vshrl.u32 %v1096, 7
          %v1098 = vsub.s32 0, %v1097
          %v1099 = vrot.slane %v1094, %v1098
          %vm1101 = vcmask 523264
          %v1103 = vsel %vm1101, %v1085, 0
          %1105 = vmatprep.subr.mxu0 0.0
          %1106 = vmatpush1.msra.mxu0 0.0
          %1107 = vmatprep.subr.mxu0 0.0
          %1108 = vmatpush1.msra.mxu0 0.0
          %1109 = vmatprep.subr.mxu0 0.0
          %1110 = vmatpush1.msra.mxu0 0.0
          %1111 = vmatprep.subr.mxu0 0.0
          %1112 = vmatpush1.msra.mxu0 0.0
          %1113 = vmatprep.subr.mxu0 0.0
          %1114 = vmatpush1.msra.mxu0 0.0
          %1115 = vmatprep.subr.mxu0 0.0
          %1116 = vmatpush1.msra.mxu0 0.0
          %1117 = vmatprep.subr.mxu0 0.0
          %1118 = vmatpush1.msra.mxu0 0.0
          %1119 = vmatprep.subr.mxu0 0.0
          %1120 = vmatpush1.msra.mxu0 0.0
          %1121 = vmatprep.subr.mxu0 0.0
          %1122 = vmatpush1.msra.mxu0 %v1093
          %1123 = vmatprep.subr.mxu0 0.0
          %1124 = vmatpush1.msra.mxu0 %v1092
          %1125 = vmatprep.subr.mxu0 0.0
          %1126 = vmatpush1.msra.mxu0 %v1091
          %1127 = vmatprep.subr.mxu0 0.0
          %1128 = vmatpush1.msra.mxu0 %v1090
          %1129 = vmatprep.subr.mxu0 0.0
          %1130 = vmatpush1.msra.mxu0 %v1089
          %1131 = vmatprep.subr.mxu0 0.0
          %1132 = vmatpush1.msra.mxu0 %v1088
          %1133 = vmatprep.subr.mxu0 0.0
          %1134 = vmatpush1.msra.mxu0 %v1087
          %1135 = vmatprep.subr.mxu0 0.0
          %1136 = vmatpush1.msra.mxu0 %v1086
          %1137 = vmatprep.subr.mxu0 0.0
          %1138 = vmatpush2.msra.mxu0 0.0
          %1139 = vmatprep.subr.mxu0 0.0
          %1140 = vmatpush2.msra.mxu0 0.0
          %1141 = vmatprep.subr.mxu0 0.0
          %1142 = vmatpush2.msra.mxu0 0.0
          %1143 = vmatprep.subr.mxu0 0.0
          %1144 = vmatpush2.msra.mxu0 0.0
          %1145 = vmatprep.subr.mxu0 0.0
          %1146 = vmatpush2.msra.mxu0 0.0
          %1147 = vmatprep.subr.mxu0 0.0
          %1148 = vmatpush2.msra.mxu0 0.0
          %1149 = vmatprep.subr.mxu0 0.0
          %1150 = vmatpush2.msra.mxu0 0.0
          %1151 = vmatprep.subr.mxu0 0.0
          %1152 = vmatpush2.msra.mxu0 0.0
          %1153 = vmatprep.subr.mxu0 0.0
          %1154 = vmatpush2.msra.mxu0 0.0
          %1155 = vmatprep.subr.mxu0 0.0
          %1156 = vmatpush2.msra.mxu0 0.0
          %1157 = vmatprep.subr.mxu0 0.0
          %1158 = vmatpush2.msra.mxu0 0.0
          %1159 = vmatprep.subr.mxu0 0.0
          %1160 = vmatpush2.msra.mxu0 0.0
          %1161 = vmatprep.subr.mxu0 0.0
          %1162 = vmatpush2.msra.mxu0 0.0
          %1163 = vmatprep.subr.mxu0 0.0
          %1164 = vmatpush2.msra.mxu0 0.0
          %1165 = vmatprep.subr.mxu0 0.0
          %1166 = vmatpush2.msra.mxu0 0.0
          %1167 = vmatprep.subr.mxu0 0.0
          %1168 = vmatpush2.msra.mxu0 0.0
          %1169 = vmatprep.mubr.f32.mxu0 0.0
          %1170 = vmatmul.mubr.f32.gmra.mxu0 %v1103
          %v1171 = vpop.f32.mrf.mxu0
          %v1172 = vadd.f32 %v1099, %v1171
          %v1173 = vpop.f32.mrf.mxu0
          %1174 = vdwg.mxu0
          %v1175 = vxor.u32 %v1172, 2147483648
          %v1176 = vmul.f32 %v1175, 1.442695
          %v1177 = vpow.pop %v1176
          %v1178 = vadd.f32 %v1177, 1.0
          %v1179 = vrcp.pop %v1178
          %v1180 = vmul.f32 1.0, %v1179
          %1181 = vst [vmem:[%s410] sm:$0xff] %v1180
        $region134: #{sentiment_forward.3} parent=117 // pred_fallthru
          _
        %p1182 = scmp.lt.s32.totalorder %s21, 0
        %s1183 = scalar_select %p1182, %s21, 0
        %s1184 = smul.addr %s1183, 8
        %s1185 = scalar_lea.vmem %s6, %s1184
        // Predicated region
        $region135: #{sentiment_forward.3} parent=117 // pred_check
          %p1186 = pneg %p189
        $region136: #{sentiment_forward.3} parent=117 // pred_check_branch
          %1188 = sbr.rel (%p1186) target = $region138
        $region137: #{sentiment_forward.3} parent=117 // pred_region
          _
        $region138: #{sentiment_forward.3} parent=117 // pred_fallthru
          _
        // Predicated region
        $region139: #{sentiment_forward.3} parent=117 // pred_check
          %p1189 = pneg %p189
        $region140: #{sentiment_forward.3} parent=117 // pred_check_branch
          %1191 = sbr.rel (%p1189) target = $region142
        $region141: #{sentiment_forward.3} parent=117 // pred_region
          %p1192 = scmp.lt.s32.totalorder %s21, 0
          %s1193 = scalar_select %p1192, %s21, 0
          %s1194 = smul.addr %s1193, 8
          %s1195 = scalar_lea.vmem %s6, %s1194
        $region142: #{sentiment_forward.3} parent=117 // pred_fallthru
          _
      $region118: #{sentiment_forward.3} parent=5 // pred_fallthru
        _
      %p1196 = scmp.le.s32.totalorder 2, %s12
      // Predicated region
      $region143: #{sentiment_forward.3} parent=5 // pred_check
        %p1197 = pneg %p1196
      $region144: #{sentiment_forward.3} parent=5 // pred_check_branch
        %1199 = sbr.rel (%p1197) target = $region146
      $region145: #{sentiment_forward.3} parent=5 // pred_region
        %s1200 = ssub.s32 %s12, 2
      $region146: #{sentiment_forward.3} parent=5 // pred_fallthru
        _
    $region6: #{sentiment_forward.3} parent=1 // loop_footer
      %s16 = sadd.s32 1, %s12
    $region7: #{sentiment_forward.3} parent=1 // loop_footer_branch
      %11 = sbr.rel target = $region3
    $region8: #{sentiment_forward.3} parent=1 // loop_exit
      _

</llo_original>
